<compile_context>
chip_gen: v6e
topology: v6e:2x2x1
jax: 0.10.0
libtpu: 0.0.40
codegen_flags: <defaults>
</compile_context>

<pallas_src>
import jax
import jax.numpy as jnp
from jax.experimental import pallas as pl
from jax.experimental.pallas import tpu as pltpu


D_IN, D_H1, D_H2, D_OUT = 2048, 1024, 256, 1


def mlp_kernel(x_ref, w1_ref, w2_ref, w3_ref, o_ref, acc_ref):
    # grid = (batch_tiles, k_tiles); k (reduction over D_IN) is the last axis.
    k = pl.program_id(1)

    @pl.when(k == 0)
    def _():
        acc_ref[...] = jnp.zeros_like(acc_ref)

    # fc1 partial: (TB, TK) bf16 @ (TK, D_H1) bf16 -> f32 accumulate in VMEM scratch.
    acc_ref[...] += jnp.dot(
        x_ref[...], w1_ref[...], preferred_element_type=jnp.float32
    )

    @pl.when(k == pl.num_programs(1) - 1)
    def _():
        # Epilogue only once per batch tile: relu -> fc2 -> relu -> fc3.
        h1 = jnp.maximum(acc_ref[...], 0.0).astype(jnp.bfloat16)
        h2 = jnp.dot(h1, w2_ref[...], preferred_element_type=jnp.float32)
        h2 = jnp.maximum(h2, 0.0).astype(jnp.bfloat16)
        logits = jnp.dot(h2, w3_ref[...], preferred_element_type=jnp.float32)
        o_ref[...] = logits.astype(o_ref.dtype)


def model_v_forward(x, w1_t, w2_t, w3_t, *, tk=512):
    """x: (B, 2048) f32; w*_t: (in, out) f32. Returns (B, 1) f32 logits."""
    B = x.shape[0]
    TB = B if B <= 128 else 128
    assert B % TB == 0, "batch must divide evenly into batch tiles"
    assert D_IN % tk == 0

    # bf16 for HBM traffic + native MXU dtype; accumulation stays f32 in-kernel.
    x_bf = x.astype(jnp.bfloat16)
    w1_bf = w1_t.astype(jnp.bfloat16)
    w2_bf = w2_t.astype(jnp.bfloat16)
    w3_bf = w3_t.astype(jnp.bfloat16)

    grid = (B // TB, D_IN // tk)
    return pl.pallas_call(
        mlp_kernel,
        out_shape=jax.ShapeDtypeStruct((B, D_OUT), jnp.float32),
        grid=grid,
        in_specs=[
            # x: batch tile b, K tile k
            pl.BlockSpec((TB, tk), lambda b, k: (b, k)),
            # w1: K tile k (pipelined against the fc1 matmul)
            pl.BlockSpec((tk, D_H1), lambda b, k: (k, 0)),
            # w2, w3: resident across the whole grid
            pl.BlockSpec((D_H1, D_H2), lambda b, k: (0, 0)),
            pl.BlockSpec((D_H2, D_OUT), lambda b, k: (0, 0)),
        ],
        out_specs=pl.BlockSpec((TB, D_OUT), lambda b, k: (b, 0)),
        scratch_shapes=[pltpu.VMEM((TB, D_H1), jnp.float32)],
        compiler_params=pltpu.CompilerParams(
            # batch tiles are independent (megacore-shardable on v7x);
            # K is a reduction carried in the scratch accumulator.
            dimension_semantics=("parallel", "arbitrary"),
        ),
    )(x_bf, w1_bf, w2_bf, w3_bf)


def reference_forward(x, w1_t, w2_t, w3_t):
    # Same bf16 storage / f32 accumulation path as the kernel.
    xb = x.astype(jnp.bfloat16)
    h1 = jnp.dot(xb, w1_t.astype(jnp.bfloat16), preferred_element_type=jnp.float32)
    h1 = jnp.maximum(h1, 0.0).astype(jnp.bfloat16)
    h2 = jnp.dot(h1, w2_t.astype(jnp.bfloat16), preferred_element_type=jnp.float32)
    h2 = jnp.maximum(h2, 0.0).astype(jnp.bfloat16)
    return jnp.dot(h2, w3_t.astype(jnp.bfloat16), preferred_element_type=jnp.float32)


if __name__ == "__main__":
    key = jax.random.PRNGKey(0)
    k_x, k1, k2, k3 = jax.random.split(key, 4)

    B = 8  # small batch; feature dims are fixed by the module (2048/1024/256/1)
    x = jax.random.normal(k_x, (B, D_IN), dtype=jnp.float32)

    # PyTorch nn.Linear weights are (out, in); build that way, transpose for kernel.
    def init_linear(k, out_f, in_f):
        bound = 1.0 / jnp.sqrt(jnp.float32(in_f))
        return jax.random.uniform(k, (out_f, in_f), jnp.float32, -bound, bound)

    w1 = init_linear(k1, D_H1, D_IN)    # (1024, 2048)
    w2 = init_linear(k2, D_H2, D_H1)    # (256, 1024)
    w3 = init_linear(k3, D_OUT, D_H2)   # (1, 256)
    w1_t, w2_t, w3_t = w1.T, w2.T, w3.T

    out = jax.block_until_ready(model_v_forward(x, w1_t, w2_t, w3_t))
    ref = jax.block_until_ready(reference_forward(x, w1_t, w2_t, w3_t))

    assert out.shape == (B, D_OUT)
    # bf16 storage => relaxed tolerance vs. the matching bf16 reference.
    assert jnp.allclose(out, ref, atol=1e-2, rtol=1e-2), float(
        jnp.max(jnp.abs(out - ref))
    )

    print("KERNEL_OK")
</pallas_src>

<mosaic_0001>
module attributes {stable_mosaic.version = 11 : i64} {
  func.func @mlp_kernel(%arg0: i32, %arg1: i32, %arg2: memref<8x512xbf16, #tpu.memory_space<vmem>>, %arg3: memref<512x1024xbf16, #tpu.memory_space<vmem>>, %arg4: memref<1024x256xbf16, #tpu.memory_space<vmem>>, %arg5: memref<256x1xbf16, #tpu.memory_space<vmem>>, %arg6: memref<8x1xf32, #tpu.memory_space<vmem>>, %arg7: memref<8x1024xf32, #tpu.memory_space<vmem>>) attributes {dimension_semantics = [#tpu.dimension_semantics<parallel>, #tpu.dimension_semantics<arbitrary>], iteration_bounds = array<i64: 1, 4>, scalar_prefetch = 0 : i64, scratch_operands = 1 : i64, tpu.core_type = #tpu.core_type<tc>, window_params = [{transform_indices = @transform_0, window_bounds = array<i64: 8, 512>}, {transform_indices = @transform_1, window_bounds = array<i64: 512, 1024>}, {pipeline_mode = #tpu.pipeline_mode<synchronous>, transform_indices = @transform_2, window_bounds = array<i64: 1024, 256>}, {pipeline_mode = #tpu.pipeline_mode<synchronous>, transform_indices = @transform_3, window_bounds = array<i64: 256, 1>}, {transform_indices = @transform_4, window_bounds = array<i64: 8, 1>}]} {
    %c0_i32 = arith.constant 0 : i32
    %0 = arith.cmpi eq, %arg1, %c0_i32 : i32
    %1 = arith.extui %0 : i1 to i32
    %c0_i32_0 = arith.constant 0 : i32
    %2 = arith.cmpi ne, %1, %c0_i32_0 : i32
    scf.if %2 {
      %cst_9 = arith.constant 0.000000e+00 : f32
      %12 = vector.broadcast %cst_9 : f32 to vector<8x1024xf32>
      %c0_10 = arith.constant 0 : index
      %c0_11 = arith.constant 0 : index
      %13 = vector.load %arg7[%c0_10, %c0_11] : memref<8x1024xf32, #tpu.memory_space<vmem>>, vector<8x1024xf32>
      tpu.vector_store %arg7[%c0_10, %c0_11], %12 {strides = array<i32>} : memref<8x1024xf32, #tpu.memory_space<vmem>>, vector<8x1024xf32>,
    } else {
    }
    %c0 = arith.constant 0 : index
    %c0_1 = arith.constant 0 : index
    %3 = vector.load %arg7[%c0, %c0_1] : memref<8x1024xf32, #tpu.memory_space<vmem>>, vector<8x1024xf32>
    %c0_2 = arith.constant 0 : index
    %c0_3 = arith.constant 0 : index
    %4 = vector.load %arg2[%c0_2, %c0_3] : memref<8x512xbf16, #tpu.memory_space<vmem>>, vector<8x512xbf16>
    %c0_4 = arith.constant 0 : index
    %c0_5 = arith.constant 0 : index
    %5 = vector.load %arg3[%c0_4, %c0_5] : memref<512x1024xbf16, #tpu.memory_space<vmem>>, vector<512x1024xbf16>
    %cst = arith.constant dense<0.000000e+00> : vector<8x1024xf32>
    %6 = tpu.matmul %4, %5, %cst {dimension_numbers = #tpu.dot_dimension_numbers<[1], [0], [0], [1], [0, 0, 1, 1], [], []>} : vector<8x512xbf16>, vector<512x1024xbf16>, vector<8x1024xf32> -> vector<8x1024xf32>
    %7 = arith.addf %3, %6 : vector<8x1024xf32>
    %c0_6 = arith.constant 0 : index
    %c0_7 = arith.constant 0 : index
    %8 = vector.load %arg7[%c0_6, %c0_7] : memref<8x1024xf32, #tpu.memory_space<vmem>>, vector<8x1024xf32>
    tpu.vector_store %arg7[%c0_6, %c0_7], %7 {strides = array<i32>} : memref<8x1024xf32, #tpu.memory_space<vmem>>, vector<8x1024xf32>,
    %c3_i32 = arith.constant 3 : i32
    %9 = arith.cmpi eq, %arg1, %c3_i32 : i32
    %10 = arith.extui %9 : i1 to i32
    %c0_i32_8 = arith.constant 0 : i32
    %11 = arith.cmpi ne, %10, %c0_i32_8 : i32
    scf.if %11 {
      %c0_9 = arith.constant 0 : index
      %c0_10 = arith.constant 0 : index
      %12 = vector.load %arg7[%c0_9, %c0_10] : memref<8x1024xf32, #tpu.memory_space<vmem>>, vector<8x1024xf32>
      %cst_11 = arith.constant 0.000000e+00 : f32
      %13 = vector.broadcast %cst_11 : f32 to vector<8x1024xf32>
      %14 = arith.maximumf %12, %13 : vector<8x1024xf32>
      %15 = arith.truncf %14 : vector<8x1024xf32> to vector<8x1024xbf16>
      %c0_12 = arith.constant 0 : index
      %c0_13 = arith.constant 0 : index
      %16 = vector.load %arg4[%c0_12, %c0_13] : memref<1024x256xbf16, #tpu.memory_space<vmem>>, vector<1024x256xbf16>
      %cst_14 = arith.constant dense<0.000000e+00> : vector<8x256xf32>
      %17 = tpu.matmul %15, %16, %cst_14 {dimension_numbers = #tpu.dot_dimension_numbers<[1], [0], [0], [1], [0, 0, 1, 1], [], []>} : vector<8x1024xbf16>, vector<1024x256xbf16>, vector<8x256xf32> -> vector<8x256xf32>
      %cst_15 = arith.constant 0.000000e+00 : f32
      %18 = vector.broadcast %cst_15 : f32 to vector<8x256xf32>
      %19 = arith.maximumf %17, %18 : vector<8x256xf32>
      %20 = arith.truncf %19 : vector<8x256xf32> to vector<8x256xbf16>
      %c0_16 = arith.constant 0 : index
      %c0_17 = arith.constant 0 : index
      %21 = vector.load %arg5[%c0_16, %c0_17] : memref<256x1xbf16, #tpu.memory_space<vmem>>, vector<256x1xbf16>
      %cst_18 = arith.constant dense<0.000000e+00> : vector<8x1xf32>
      %22 = tpu.matmul %20, %21, %cst_18 {dimension_numbers = #tpu.dot_dimension_numbers<[1], [0], [0], [1], [0, 0, 1, 1], [], []>} : vector<8x256xbf16>, vector<256x1xbf16>, vector<8x1xf32> -> vector<8x1xf32>
      %c0_19 = arith.constant 0 : index
      %c0_20 = arith.constant 0 : index
      %23 = vector.load %arg6[%c0_19, %c0_20] : memref<8x1xf32, #tpu.memory_space<vmem>>, vector<8x1xf32>
      tpu.vector_store %arg6[%c0_19, %c0_20], %22 {strides = array<i32>} : memref<8x1xf32, #tpu.memory_space<vmem>>, vector<8x1xf32>,
    } else {
    }
    return
  }
  func.func @transform_0(%arg0: i32, %arg1: i32) -> (i32, i32) {
    %c0_i32 = arith.constant 0 : i32
    return %arg0, %arg1 : i32, i32
  }
  func.func @transform_1(%arg0: i32, %arg1: i32) -> (i32, i32) {
    %c0_i32 = arith.constant 0 : i32
    %c0_i32_0 = arith.constant 0 : i32
    return %arg1, %c0_i32 : i32, i32
  }
  func.func @transform_2(%arg0: i32, %arg1: i32) -> (i32, i32) {
    %c0_i32 = arith.constant 0 : i32
    %c0_i32_0 = arith.constant 0 : i32
    %c0_i32_1 = arith.constant 0 : i32
    return %c0_i32, %c0_i32_0 : i32, i32
  }
  func.func @transform_3(%arg0: i32, %arg1: i32) -> (i32, i32) {
    %c0_i32 = arith.constant 0 : i32
    %c0_i32_0 = arith.constant 0 : i32
    %c0_i32_1 = arith.constant 0 : i32
    return %c0_i32, %c0_i32_0 : i32, i32
  }
  func.func @transform_4(%arg0: i32, %arg1: i32) -> (i32, i32) {
    %c0_i32 = arith.constant 0 : i32
    %c0_i32_0 = arith.constant 0 : i32
    return %arg0, %c0_i32 : i32, i32
  }
}

</mosaic_0001>

<llo_original>
// kernel: tpu_custom_call.1
$region0: #{tpu_custom_call.1}
  #allocation0 [shape = 'u32[]', space=smem, size = 0x4, offset = 0x4, fixed_abs, tag = 'smem constant byte address 0x4 - core index']
  #allocation1 [shape = 'u32[144,128]{1,0:T(1,128)}', space=vmem, size = 0x12000, scoped, tag = 'internal scratch']
  #allocation2 [shape = 'f32[8,1024]{1,0:T(8,128)}', space=vmem, size = 0x8000, scoped, tag = 'scratch operand']
  %s0 = inlined_call_operand.hbm [shape: bf16[8,2048], index: 0, kind: input, shape index: {}]
  %s1 = inlined_call_operand.hbm [shape: bf16[2048,1024], index: 1, kind: input, shape index: {}]
  %s2 = inlined_call_operand.hbm [shape: bf16[1024,256], index: 2, kind: input, shape index: {}]
  %s3 = inlined_call_operand.vmem [shape: bf16[256,1], index: 3, kind: input, shape index: {}]
  %s4 = inlined_call_operand.vmem [shape: f32[8,1], index: 4, kind: output, shape index: {}]
  %s5 = sld [smem:[#allocation0]]
  $region69: #{tpu_custom_call.1} parent=0
    _
  %s7 = ssub.s32 1, %s5
  %s8 = scalar_select 0, %s7, %s5
  $region1: #{tpu_custom_call.1} parent=0
    #allocation3 [shape = 'u8[16384]{0}', space=vmem, size = 0x4000, scoped, tag = 'input window, operand 0']
    #allocation4 [shape = 's32[2]{0}', space=sflag, size = 0x8, scoped, tag = 'scoped memory for tpu_custom_call.1']
    #allocation5 [shape = 'u8[2097152]{0}', space=vmem, size = 0x200000, scoped, tag = 'input window, operand 1']
    #allocation6 [shape = 's32[2]{0}', space=sflag, size = 0x8, scoped, tag = 'scoped memory for tpu_custom_call.1']
    #allocation7 [shape = 'u8[524288]{0}', space=vmem, size = 0x80000, scoped, tag = 'input window, operand 2, single buffered']
    %9 = vsyncpa [#allocation4], 0
    %s10 = scalar_lea.sflag [#allocation4], 1
    %11 = vsyncpa %s10, 0
    %12 = vsyncpa [#allocation6], 0
    %s13 = scalar_lea.sflag [#allocation6], 1
    %14 = vsyncpa %s13, 0
    loop: start=0, step=1, limit=6
    $region2: #{tpu_custom_call.1} parent=1 // loop_pre_header
      _
    $region3: #{tpu_custom_call.1} parent=1 // loop_header
      %s16 = sphi 0, %s20
      %p17 = scmp.ge.s32.totalorder %s16, 6
      %s23 = sphi 0, %s35
      %s24 = sphi 0, %s31
      %s25 = sphi 0, %s23
      %s26 = sphi 0, %s24
      %s27 = sphi 0, %s25
      %s28 = sphi 0, %s26
      %s40 = sphi 0, %s42
      %s43 = sphi 0, %s40
      %s44 = sphi 0, %s43
      %s60 = sphi 0, %s44
      %s66 = sphi 0, %s68
      %s69 = sphi 0, %s66
      %s70 = sphi 0, %s69
      %s86 = sphi 0, %s70
      %s90 = sphi 0, %s90
      %s92 = sphi 0, %s90
      %s93 = sphi 0, %s92
      %s107 = sphi 0, %s93
      %s111 = sphi 0, %s111
      %s113 = sphi 0, %s111
      %s114 = sphi 0, %s113
      %s128 = sphi 0, %s114
      %s134 = sphi 0, %s136
      %s137 = sphi 0, %s134
      %s138 = sphi 0, %s137
      %s154 = sphi 0, %s138
    $region4: #{tpu_custom_call.1} parent=1 // loop_header_branch
      %19 = sbr.rel (%p17) target = $region8
    $region5: #{tpu_custom_call.1} parent=1 // loop_body
      %s21 = ssub.s32 %s16, 1
      %s22 = ssub.s32 %s16, 2
      %s29 = sadd.s32 1, %s24
      %p30 = scmp.ge.s32.totalorder %s29, 4
      %s31 = scalar_select %p30, 0, %s29
      %s32 = sadd.s32 1, %s23
      %s33 = scalar_select %p30, %s32, %s23
      %p34 = scmp.ge.s32.totalorder %s33, 1
      %s35 = scalar_select %p34, 0, %s33
      %s36 = ssub.s32 %s23, %s35
      %s37 = ssub.s32 %s24, %s31
      %s38 = sor.u32 %s36, %s37
      %p39 = scmp.eq.s32.totalorder %s38, 0
      %s41 = sadd.s32 %s40, 1
      %s42 = scalar_select %p39, %s40, %s41
      %p45 = pneg %p39
      %p46 = scmp.eq.s32.totalorder %s16, 3
      %p47 = por %p45, %p46
      %p48 = scmp.ne.s32.totalorder %s40, %s43
      %p49 = scmp.eq.s32.totalorder %s16, 0
      %p50 = por %p48, %p49
      %p51 = scmp.ne.s32.totalorder %s40, %s43
      %p52 = scmp.eq.s32.totalorder %s21, 3
      %p53 = por %p51, %p52
      %p54 = scmp.ne.s32.totalorder %s43, %s44
      %p55 = scmp.eq.s32.totalorder %s21, 0
      %p56 = por %p54, %p55
      %p57 = scmp.ne.s32.totalorder %s43, %s44
      %p58 = scmp.eq.s32.totalorder %s22, 3
      %p59 = por %p57, %p58
      %p61 = scmp.ne.s32.totalorder %s44, %s60
      %p62 = scmp.eq.s32.totalorder %s22, 0
      %p63 = por %p61, %p62
      %s64 = ssub.s32 %s24, %s31
      %p65 = scmp.eq.s32.totalorder %s64, 0
      %s67 = sadd.s32 %s66, 1
      %s68 = scalar_select %p65, %s66, %s67
      %p71 = pneg %p65
      %p72 = scmp.eq.s32.totalorder %s16, 3
      %p73 = por %p71, %p72
      %p74 = scmp.ne.s32.totalorder %s66, %s69
      %p75 = scmp.eq.s32.totalorder %s16, 0
      %p76 = por %p74, %p75
      %p77 = scmp.ne.s32.totalorder %s66, %s69
      %p78 = scmp.eq.s32.totalorder %s21, 3
      %p79 = por %p77, %p78
      %p80 = scmp.ne.s32.totalorder %s69, %s70
      %p81 = scmp.eq.s32.totalorder %s21, 0
      %p82 = por %p80, %p81
      %p83 = scmp.ne.s32.totalorder %s69, %s70
      %p84 = scmp.eq.s32.totalorder %s22, 3
      %p85 = por %p83, %p84
      %p87 = scmp.ne.s32.totalorder %s70, %s86
      %p88 = scmp.eq.s32.totalorder %s22, 0
      %p89 = por %p87, %p88
      %s91 = sadd.s32 %s90, 1
      %p94 = scmp.eq.s32.totalorder %s16, 3
      %p95 = scmp.ne.s32.totalorder %s90, %s92
      %p96 = scmp.eq.s32.totalorder %s16, 0
      %p97 = por %p95, %p96
      %p98 = scmp.ne.s32.totalorder %s90, %s92
      %p99 = scmp.eq.s32.totalorder %s21, 3
      %p100 = por %p98, %p99
      %p101 = scmp.ne.s32.totalorder %s92, %s93
      %p102 = scmp.eq.s32.totalorder %s21, 0
      %p103 = por %p101, %p102
      %p104 = scmp.ne.s32.totalorder %s92, %s93
      %p105 = scmp.eq.s32.totalorder %s22, 3
      %p106 = por %p104, %p105
      %p108 = scmp.ne.s32.totalorder %s93, %s107
      %p109 = scmp.eq.s32.totalorder %s22, 0
      %p110 = por %p108, %p109
      %s112 = sadd.s32 %s111, 1
      %p115 = scmp.eq.s32.totalorder %s16, 3
      %p116 = scmp.ne.s32.totalorder %s111, %s113
      %p117 = scmp.eq.s32.totalorder %s16, 0
      %p118 = por %p116, %p117
      %p119 = scmp.ne.s32.totalorder %s111, %s113
      %p120 = scmp.eq.s32.totalorder %s21, 3
      %p121 = por %p119, %p120
      %p122 = scmp.ne.s32.totalorder %s113, %s114
      %p123 = scmp.eq.s32.totalorder %s21, 0
      %p124 = por %p122, %p123
      %p125 = scmp.ne.s32.totalorder %s113, %s114
      %p126 = scmp.eq.s32.totalorder %s22, 3
      %p127 = por %p125, %p126
      %p129 = scmp.ne.s32.totalorder %s114, %s128
      %p130 = scmp.eq.s32.totalorder %s22, 0
      %p131 = por %p129, %p130
      %s132 = ssub.s32 %s23, %s35
      %p133 = scmp.eq.s32.totalorder %s132, 0
      %s135 = sadd.s32 %s134, 1
      %s136 = scalar_select %p133, %s134, %s135
      %p139 = pneg %p133
      %p140 = scmp.eq.s32.totalorder %s16, 3
      %p141 = por %p139, %p140
      %p142 = scmp.ne.s32.totalorder %s134, %s137
      %p143 = scmp.eq.s32.totalorder %s16, 0
      %p144 = por %p142, %p143
      %p145 = scmp.ne.s32.totalorder %s134, %s137
      %p146 = scmp.eq.s32.totalorder %s21, 3
      %p147 = por %p145, %p146
      %p148 = scmp.ne.s32.totalorder %s137, %s138
      %p149 = scmp.eq.s32.totalorder %s21, 0
      %p150 = por %p148, %p149
      %p151 = scmp.ne.s32.totalorder %s137, %s138
      %p152 = scmp.eq.s32.totalorder %s22, 3
      %p153 = por %p151, %p152
      %p155 = scmp.ne.s32.totalorder %s138, %s154
      %p156 = scmp.eq.s32.totalorder %s22, 0
      %p157 = por %p155, %p156
      %p158 = scmp.le.s32.totalorder 1, %s16
      %p159 = scmp.lt.s32.totalorder %s16, 5
      %p160 = pnand %p158, %p159
      %p161 = pneg %p160
      // Predicated region
      $region9: #{tpu_custom_call.1} parent=5 // pred_check
        _
      $region10: #{tpu_custom_call.1} parent=5 // pred_check_branch
        %163 = sbr.rel (%p160) target = $region12
      $region11: #{tpu_custom_call.1} parent=5 // pred_region
        %s164 = ssub.s32 %s16, 1
        // Predicated region
        $region13: #{tpu_custom_call.1} parent=11 // pred_check
          %p165 = pneg %p103
        $region14: #{tpu_custom_call.1} parent=11 // pred_check_branch
          %167 = sbr.rel (%p165) target = $region16
        $region15: #{tpu_custom_call.1} parent=11 // pred_region
          %s169 = ssub.s32 16384, 16384
          %170 = vsyncadd [#allocation6], %s169
          %s171 = sshll.u32 [#allocation7], 4
          %s172 = int_to_ptr.vmem [resolvable:$true] %s171
          %177 = dma.hbm_to_vmem [thread:$0]  %s2, 16384, %s172, [#allocation6], 128, 128, 8
        $region16: #{tpu_custom_call.1} parent=11 // pred_fallthru
          _
        // Predicated region
        $region17: #{tpu_custom_call.1} parent=11 // pred_check
          %p178 = pneg %p124
        $region18: #{tpu_custom_call.1} parent=11 // pred_check_branch
          %180 = sbr.rel (%p178) target = $region20
        $region19: #{tpu_custom_call.1} parent=11 // pred_region
          _
        $region20: #{tpu_custom_call.1} parent=11 // pred_fallthru
          _
      $region12: #{tpu_custom_call.1} parent=5 // pred_fallthru
        _
      %p181 = scmp.lt.s32.totalorder %s16, 4
      // Predicated region
      $region21: #{tpu_custom_call.1} parent=5 // pred_check
        %p182 = pneg %p181
      $region22: #{tpu_custom_call.1} parent=5 // pred_check_branch
        %184 = sbr.rel (%p182) target = $region24
      $region23: #{tpu_custom_call.1} parent=5 // pred_region
        // Predicated region
        $region25: #{tpu_custom_call.1} parent=23 // pred_check
          %p185 = pneg %p50
        $region26: #{tpu_custom_call.1} parent=23 // pred_check_branch
          %187 = sbr.rel (%p185) target = $region28
        $region27: #{tpu_custom_call.1} parent=23 // pred_region
          %s188 = sand.u32 %s40, 1
          %s189 = scalar_lea.sflag [#allocation4], %s188
          %s190 = sand.u32 %s40, 1
          %s191 = smul.addr %s190, 16
          %s192 = scalar_lea.vmem [#allocation3], %s191
          %s193 = smul.u32 4, %s24
          %s195 = ssub.s32 256, 256
          %196 = vsyncadd %s189, %s195
          %s197 = smul.addr %s23, 16
          %s198 = sadd.s32 %s193, %s197
          %s199 = smul.addr %s198, 64
          %s200 = scalar_lea.hbm %s0, %s199
          %s202 = sshll.u32 %s192, 4
          %s203 = int_to_ptr.vmem [resolvable:$true] %s202
          %205 = dma.hbm_to_vmem [thread:$0]  %s200, 256, %s203, %s189
        $region28: #{tpu_custom_call.1} parent=23 // pred_fallthru
          _
        // Predicated region
        $region29: #{tpu_custom_call.1} parent=23 // pred_check
          %p206 = pneg %p76
        $region30: #{tpu_custom_call.1} parent=23 // pred_check_branch
          %208 = sbr.rel (%p206) target = $region32
        $region31: #{tpu_custom_call.1} parent=23 // pred_region
          %s209 = sand.u32 %s16, 1
          %s210 = scalar_lea.sflag [#allocation6], %s209
          %s211 = sand.u32 %s66, 1
          %s212 = smul.addr %s211, 2048
          %s213 = scalar_lea.vmem [#allocation5], %s212
          %s214 = smul.u32 64, %s24
          %s216 = ssub.s32 32768, 32768
          %217 = vsyncadd %s210, %s216
          %s218 = smul.addr %s214, 8
          %s219 = smul.addr %s218, 64
          %s220 = scalar_lea.hbm %s1, %s219
          %s221 = sshll.u32 %s213, 4
          %s222 = int_to_ptr.vmem [resolvable:$true] %s221
          %227 = dma.hbm_to_vmem [thread:$0]  %s220, 32768, %s222, %s210, 512, 512, 32
        $region32: #{tpu_custom_call.1} parent=23 // pred_fallthru
          _
      $region24: #{tpu_custom_call.1} parent=5 // pred_fallthru
        _
      %p228 = scmp.le.s32.totalorder 1, %s16
      %p229 = scmp.lt.s32.totalorder %s16, 5
      %p230 = pnand %p228, %p229
      %p231 = pneg %p230
      // Predicated region
      $region33: #{tpu_custom_call.1} parent=5 // pred_check
        _
      $region34: #{tpu_custom_call.1} parent=5 // pred_check_branch
        %233 = sbr.rel (%p230) target = $region36
      $region35: #{tpu_custom_call.1} parent=5 // pred_region
        %s234 = ssub.s32 %s16, 1
        %s235 = sand.u32 %s43, 1
        %s236 = scalar_lea.sflag [#allocation4], %s235
        %s237 = sand.u32 %s43, 1
        %s238 = smul.addr %s237, 16
        %s239 = scalar_lea.vmem [#allocation3], %s238
        // Predicated region
        $region37: #{tpu_custom_call.1} parent=35 // pred_check
          %p240 = pneg %p56
        $region38: #{tpu_custom_call.1} parent=35 // pred_check_branch
          %242 = sbr.rel (%p240) target = $region40
        $region39: #{tpu_custom_call.1} parent=35 // pred_region
          %243 = dma.done %s236, 256
        $region40: #{tpu_custom_call.1} parent=35 // pred_fallthru
          _
        %s244 = sand.u32 %s21, 1
        %s245 = scalar_lea.sflag [#allocation6], %s244
        %s246 = sand.u32 %s69, 1
        %s247 = smul.addr %s246, 2048
        %s248 = scalar_lea.vmem [#allocation5], %s247
        // Predicated region
        $region41: #{tpu_custom_call.1} parent=35 // pred_check
          %p249 = pneg %p82
        $region42: #{tpu_custom_call.1} parent=35 // pred_check_branch
          %251 = sbr.rel (%p249) target = $region44
        $region43: #{tpu_custom_call.1} parent=35 // pred_region
          %252 = dma.done %s245, 32768
        $region44: #{tpu_custom_call.1} parent=35 // pred_fallthru
          _
        // Predicated region
        $region45: #{tpu_custom_call.1} parent=35 // pred_check
          %p253 = pneg %p103
        $region46: #{tpu_custom_call.1} parent=35 // pred_check_branch
          %255 = sbr.rel (%p253) target = $region48
        $region47: #{tpu_custom_call.1} parent=35 // pred_region
          %256 = dma.done [#allocation6], 16384
        $region48: #{tpu_custom_call.1} parent=35 // pred_fallthru
          _
        %s257 = sand.u32 %s43, 1
        %s258 = scalar_lea.sflag [#allocation4], %s257
        %s259 = sand.u32 %s43, 1
        %s260 = smul.addr %s259, 16
        %s261 = scalar_lea.vmem [#allocation3], %s260
        %p262 = pneg %p56
        %p263 = pneg %p53
        %s264 = sand.u32 %s21, 1
        %s265 = scalar_lea.sflag [#allocation6], %s264
        %s266 = sand.u32 %s69, 1
        %s267 = smul.addr %s266, 2048
        %s268 = scalar_lea.vmem [#allocation5], %s267
        %p269 = pneg %p82
        %p270 = pneg %p79
        %p271 = pneg %p103
        %p272 = pneg %p100
        %p273 = pneg %p124
        %p274 = pneg %p121
        %p275 = pneg %p150
        %p276 = pneg %p147
        %p277 = scmp.lt.s32.totalorder %s25, 0
        %s278 = scalar_select %p277, %s25, 0
        %s279 = smul.addr %s278, 8
        %s280 = scalar_lea.vmem %s4, %s279
        %s281 = smul.u32 4, %s26
        %s282 = smul.u32 64, %s26
        %p283 = scmp.lt.s32.totalorder %s25, 0
        %s284 = scalar_select %p283, %s25, 0
        %s285 = smul.addr %s284, 8
        %s286 = scalar_lea.vmem %s4, %s285
        %p288 = scmp.eq.s32.totalorder %s26, 0
        // Predicated region
        $region49: #{tpu_custom_call.1} parent=35 // pred_check
          %p289 = pneg %p288
        $region50: #{tpu_custom_call.1} parent=35 // pred_check_branch
          %291 = sbr.rel (%p289) target = $region52
        $region51: #{tpu_custom_call.1} parent=35 // pred_region
          %292 = vst [vmem:[#allocation2] sm:$0xff] 0.0
          %293 = vst [vmem:[#allocation2 + $0x8] sm:$0xff] 0.0
          %294 = vst [vmem:[#allocation2 + $0x10] sm:$0xff] 0.0
          %295 = vst [vmem:[#allocation2 + $0x18] sm:$0xff] 0.0
          %296 = vst [vmem:[#allocation2 + $0x20] sm:$0xff] 0.0
          %297 = vst [vmem:[#allocation2 + $0x28] sm:$0xff] 0.0
          %298 = vst [vmem:[#allocation2 + $0x30] sm:$0xff] 0.0
          %299 = vst [vmem:[#allocation2 + $0x38] sm:$0xff] 0.0
        $region52: #{tpu_custom_call.1} parent=35 // pred_fallthru
          _
        %v300 = vld [vmem:[#allocation2] sm:$0xff]
        %v301 = vld [vmem:[#allocation2 + $0x8] sm:$0xff]
        %v302 = vld [vmem:[#allocation2 + $0x10] sm:$0xff]
        %v303 = vld [vmem:[#allocation2 + $0x18] sm:$0xff]
        %v304 = vld [vmem:[#allocation2 + $0x20] sm:$0xff]
        %v305 = vld [vmem:[#allocation2 + $0x28] sm:$0xff]
        %v306 = vld [vmem:[#allocation2 + $0x30] sm:$0xff]
        %v307 = vld [vmem:[#allocation2 + $0x38] sm:$0xff]
        %v308 = vld [vmem:[%s239] sm:$0xff]
        %v309 = vld [vmem:[%s239 + $0x8] sm:$0xff]
        %v310 = vld [vmem:[%s248] sm:$0xff]
        %v311 = vld [vmem:[%s248 + $0x8] sm:$0xff]
        %v312 = vld [vmem:[%s248 + $0x10] sm:$0xff]
        %v313 = vld [vmem:[%s248 + $0x18] sm:$0xff]
        %v314 = vld [vmem:[%s248 + $0x20] sm:$0xff]
        %v315 = vld [vmem:[%s248 + $0x28] sm:$0xff]
        %v316 = vld [vmem:[%s248 + $0x30] sm:$0xff]
        %v317 = vld [vmem:[%s248 + $0x38] sm:$0xff]
        %v318 = vld [vmem:[%s248 + $0x40] sm:$0xff]
        %v319 = vld [vmem:[%s248 + $0x48] sm:$0xff]
        %v320 = vld [vmem:[%s248 + $0x50] sm:$0xff]
        %v321 = vld [vmem:[%s248 + $0x58] sm:$0xff]
        %v322 = vld [vmem:[%s248 + $0x60] sm:$0xff]
        %v323 = vld [vmem:[%s248 + $0x68] sm:$0xff]
        %v324 = vld [vmem:[%s248 + $0x70] sm:$0xff]
        %v325 = vld [vmem:[%s248 + $0x78] sm:$0xff]
        %v326 = vld [vmem:[%s248 + $0x80] sm:$0xff]
        %v327 = vld [vmem:[%s248 + $0x88] sm:$0xff]
        %v328 = vld [vmem:[%s248 + $0x90] sm:$0xff]
        %v329 = vld [vmem:[%s248 + $0x98] sm:$0xff]
        %v330 = vld [vmem:[%s248 + $0xa0] sm:$0xff]
        %v331 = vld [vmem:[%s248 + $0xa8] sm:$0xff]
        %v332 = vld [vmem:[%s248 + $0xb0] sm:$0xff]
        %v333 = vld [vmem:[%s248 + $0xb8] sm:$0xff]
        %v334 = vld [vmem:[%s248 + $0xc0] sm:$0xff]
        %v335 = vld [vmem:[%s248 + $0xc8] sm:$0xff]
        %v336 = vld [vmem:[%s248 + $0xd0] sm:$0xff]
        %v337 = vld [vmem:[%s248 + $0xd8] sm:$0xff]
        %v338 = vld [vmem:[%s248 + $0xe0] sm:$0xff]
        %v339 = vld [vmem:[%s248 + $0xe8] sm:$0xff]
        %v340 = vld [vmem:[%s248 + $0xf0] sm:$0xff]
        %v341 = vld [vmem:[%s248 + $0xf8] sm:$0xff]
        %v342 = vld [vmem:[%s248 + $0x100] sm:$0xff]
        %v343 = vld [vmem:[%s248 + $0x108] sm:$0xff]
        %v344 = vld [vmem:[%s248 + $0x110] sm:$0xff]
        %v345 = vld [vmem:[%s248 + $0x118] sm:$0xff]
        %v346 = vld [vmem:[%s248 + $0x120] sm:$0xff]
        %v347 = vld [vmem:[%s248 + $0x128] sm:$0xff]
        %v348 = vld [vmem:[%s248 + $0x130] sm:$0xff]
        %v349 = vld [vmem:[%s248 + $0x138] sm:$0xff]
        %v350 = vld [vmem:[%s248 + $0x140] sm:$0xff]
        %v351 = vld [vmem:[%s248 + $0x148] sm:$0xff]
        %v352 = vld [vmem:[%s248 + $0x150] sm:$0xff]
        %v353 = vld [vmem:[%s248 + $0x158] sm:$0xff]
        %v354 = vld [vmem:[%s248 + $0x160] sm:$0xff]
        %v355 = vld [vmem:[%s248 + $0x168] sm:$0xff]
        %v356 = vld [vmem:[%s248 + $0x170] sm:$0xff]
        %v357 = vld [vmem:[%s248 + $0x178] sm:$0xff]
        %v358 = vld [vmem:[%s248 + $0x180] sm:$0xff]
        %v359 = vld [vmem:[%s248 + $0x188] sm:$0xff]
        %v360 = vld [vmem:[%s248 + $0x190] sm:$0xff]
        %v361 = vld [vmem:[%s248 + $0x198] sm:$0xff]
        %v362 = vld [vmem:[%s248 + $0x1a0] sm:$0xff]
        %v363 = vld [vmem:[%s248 + $0x1a8] sm:$0xff]
        %v364 = vld [vmem:[%s248 + $0x1b0] sm:$0xff]
        %v365 = vld [vmem:[%s248 + $0x1b8] sm:$0xff]
        %v366 = vld [vmem:[%s248 + $0x1c0] sm:$0xff]
        %v367 = vld [vmem:[%s248 + $0x1c8] sm:$0xff]
        %v368 = vld [vmem:[%s248 + $0x1d0] sm:$0xff]
        %v369 = vld [vmem:[%s248 + $0x1d8] sm:$0xff]
        %v370 = vld [vmem:[%s248 + $0x1e0] sm:$0xff]
        %v371 = vld [vmem:[%s248 + $0x1e8] sm:$0xff]
        %v372 = vld [vmem:[%s248 + $0x1f0] sm:$0xff]
        %v373 = vld [vmem:[%s248 + $0x1f8] sm:$0xff]
        %v374 = vld [vmem:[%s248 + $0x200] sm:$0xff]
        %v375 = vld [vmem:[%s248 + $0x208] sm:$0xff]
        %v376 = vld [vmem:[%s248 + $0x210] sm:$0xff]
        %v377 = vld [vmem:[%s248 + $0x218] sm:$0xff]
        %v378 = vld [vmem:[%s248 + $0x220] sm:$0xff]
        %v379 = vld [vmem:[%s248 + $0x228] sm:$0xff]
        %v380 = vld [vmem:[%s248 + $0x230] sm:$0xff]
        %v381 = vld [vmem:[%s248 + $0x238] sm:$0xff]
        %v382 = vld [vmem:[%s248 + $0x240] sm:$0xff]
        %v383 = vld [vmem:[%s248 + $0x248] sm:$0xff]
        %v384 = vld [vmem:[%s248 + $0x250] sm:$0xff]
        %v385 = vld [vmem:[%s248 + $0x258] sm:$0xff]
        %v386 = vld [vmem:[%s248 + $0x260] sm:$0xff]
        %v387 = vld [vmem:[%s248 + $0x268] sm:$0xff]
        %v388 = vld [vmem:[%s248 + $0x270] sm:$0xff]
        %v389 = vld [vmem:[%s248 + $0x278] sm:$0xff]
        %v390 = vld [vmem:[%s248 + $0x280] sm:$0xff]
        %v391 = vld [vmem:[%s248 + $0x288] sm:$0xff]
        %v392 = vld [vmem:[%s248 + $0x290] sm:$0xff]
        %v393 = vld [vmem:[%s248 + $0x298] sm:$0xff]
        %v394 = vld [vmem:[%s248 + $0x2a0] sm:$0xff]
        %v395 = vld [vmem:[%s248 + $0x2a8] sm:$0xff]
        %v396 = vld [vmem:[%s248 + $0x2b0] sm:$0xff]
        %v397 = vld [vmem:[%s248 + $0x2b8] sm:$0xff]
        %v398 = vld [vmem:[%s248 + $0x2c0] sm:$0xff]
        %v399 = vld [vmem:[%s248 + $0x2c8] sm:$0xff]
        %v400 = vld [vmem:[%s248 + $0x2d0] sm:$0xff]
        %v401 = vld [vmem:[%s248 + $0x2d8] sm:$0xff]
        %v402 = vld [vmem:[%s248 + $0x2e0] sm:$0xff]
        %v403 = vld [vmem:[%s248 + $0x2e8] sm:$0xff]
        %v404 = vld [vmem:[%s248 + $0x2f0] sm:$0xff]
        %v405 = vld [vmem:[%s248 + $0x2f8] sm:$0xff]
        %v406 = vld [vmem:[%s248 + $0x300] sm:$0xff]
        %v407 = vld [vmem:[%s248 + $0x308] sm:$0xff]
        %v408 = vld [vmem:[%s248 + $0x310] sm:$0xff]
        %v409 = vld [vmem:[%s248 + $0x318] sm:$0xff]
        %v410 = vld [vmem:[%s248 + $0x320] sm:$0xff]
        %v411 = vld [vmem:[%s248 + $0x328] sm:$0xff]
        %v412 = vld [vmem:[%s248 + $0x330] sm:$0xff]
        %v413 = vld [vmem:[%s248 + $0x338] sm:$0xff]
        %v414 = vld [vmem:[%s248 + $0x340] sm:$0xff]
        %v415 = vld [vmem:[%s248 + $0x348] sm:$0xff]
        %v416 = vld [vmem:[%s248 + $0x350] sm:$0xff]
        %v417 = vld [vmem:[%s248 + $0x358] sm:$0xff]
        %v418 = vld [vmem:[%s248 + $0x360] sm:$0xff]
        %v419 = vld [vmem:[%s248 + $0x368] sm:$0xff]
        %v420 = vld [vmem:[%s248 + $0x370] sm:$0xff]
        %v421 = vld [vmem:[%s248 + $0x378] sm:$0xff]
        %v422 = vld [vmem:[%s248 + $0x380] sm:$0xff]
        %v423 = vld [vmem:[%s248 + $0x388] sm:$0xff]
        %v424 = vld [vmem:[%s248 + $0x390] sm:$0xff]
        %v425 = vld [vmem:[%s248 + $0x398] sm:$0xff]
        %v426 = vld [vmem:[%s248 + $0x3a0] sm:$0xff]
        %v427 = vld [vmem:[%s248 + $0x3a8] sm:$0xff]
        %v428 = vld [vmem:[%s248 + $0x3b0] sm:$0xff]
        %v429 = vld [vmem:[%s248 + $0x3b8] sm:$0xff]
        %v430 = vld [vmem:[%s248 + $0x3c0] sm:$0xff]
        %v431 = vld [vmem:[%s248 + $0x3c8] sm:$0xff]
        %v432 = vld [vmem:[%s248 + $0x3d0] sm:$0xff]
        %v433 = vld [vmem:[%s248 + $0x3d8] sm:$0xff]
        %v434 = vld [vmem:[%s248 + $0x3e0] sm:$0xff]
        %v435 = vld [vmem:[%s248 + $0x3e8] sm:$0xff]
        %v436 = vld [vmem:[%s248 + $0x3f0] sm:$0xff]
        %v437 = vld [vmem:[%s248 + $0x3f8] sm:$0xff]
        %v438 = vld [vmem:[%s248 + $0x400] sm:$0xff]
        %v439 = vld [vmem:[%s248 + $0x408] sm:$0xff]
        %v440 = vld [vmem:[%s248 + $0x410] sm:$0xff]
        %v441 = vld [vmem:[%s248 + $0x418] sm:$0xff]
        %v442 = vld [vmem:[%s248 + $0x420] sm:$0xff]
        %v443 = vld [vmem:[%s248 + $0x428] sm:$0xff]
        %v444 = vld [vmem:[%s248 + $0x430] sm:$0xff]
        %v445 = vld [vmem:[%s248 + $0x438] sm:$0xff]
        %v446 = vld [vmem:[%s248 + $0x440] sm:$0xff]
        %v447 = vld [vmem:[%s248 + $0x448] sm:$0xff]
        %v448 = vld [vmem:[%s248 + $0x450] sm:$0xff]
        %v449 = vld [vmem:[%s248 + $0x458] sm:$0xff]
        %v450 = vld [vmem:[%s248 + $0x460] sm:$0xff]
        %v451 = vld [vmem:[%s248 + $0x468] sm:$0xff]
        %v452 = vld [vmem:[%s248 + $0x470] sm:$0xff]
        %v453 = vld [vmem:[%s248 + $0x478] sm:$0xff]
        %v454 = vld [vmem:[%s248 + $0x480] sm:$0xff]
        %v455 = vld [vmem:[%s248 + $0x488] sm:$0xff]
        %v456 = vld [vmem:[%s248 + $0x490] sm:$0xff]
        %v457 = vld [vmem:[%s248 + $0x498] sm:$0xff]
        %v458 = vld [vmem:[%s248 + $0x4a0] sm:$0xff]
        %v459 = vld [vmem:[%s248 + $0x4a8] sm:$0xff]
        %v460 = vld [vmem:[%s248 + $0x4b0] sm:$0xff]
        %v461 = vld [vmem:[%s248 + $0x4b8] sm:$0xff]
        %v462 = vld [vmem:[%s248 + $0x4c0] sm:$0xff]
        %v463 = vld [vmem:[%s248 + $0x4c8] sm:$0xff]
        %v464 = vld [vmem:[%s248 + $0x4d0] sm:$0xff]
        %v465 = vld [vmem:[%s248 + $0x4d8] sm:$0xff]
        %v466 = vld [vmem:[%s248 + $0x4e0] sm:$0xff]
        %v467 = vld [vmem:[%s248 + $0x4e8] sm:$0xff]
        %v468 = vld [vmem:[%s248 + $0x4f0] sm:$0xff]
        %v469 = vld [vmem:[%s248 + $0x4f8] sm:$0xff]
        %v470 = vld [vmem:[%s248 + $0x500] sm:$0xff]
        %v471 = vld [vmem:[%s248 + $0x508] sm:$0xff]
        %v472 = vld [vmem:[%s248 + $0x510] sm:$0xff]
        %v473 = vld [vmem:[%s248 + $0x518] sm:$0xff]
        %v474 = vld [vmem:[%s248 + $0x520] sm:$0xff]
        %v475 = vld [vmem:[%s248 + $0x528] sm:$0xff]
        %v476 = vld [vmem:[%s248 + $0x530] sm:$0xff]
        %v477 = vld [vmem:[%s248 + $0x538] sm:$0xff]
        %v478 = vld [vmem:[%s248 + $0x540] sm:$0xff]
        %v479 = vld [vmem:[%s248 + $0x548] sm:$0xff]
        %v480 = vld [vmem:[%s248 + $0x550] sm:$0xff]
        %v481 = vld [vmem:[%s248 + $0x558] sm:$0xff]
        %v482 = vld [vmem:[%s248 + $0x560] sm:$0xff]
        %v483 = vld [vmem:[%s248 + $0x568] sm:$0xff]
        %v484 = vld [vmem:[%s248 + $0x570] sm:$0xff]
        %v485 = vld [vmem:[%s248 + $0x578] sm:$0xff]
        %v486 = vld [vmem:[%s248 + $0x580] sm:$0xff]
        %v487 = vld [vmem:[%s248 + $0x588] sm:$0xff]
        %v488 = vld [vmem:[%s248 + $0x590] sm:$0xff]
        %v489 = vld [vmem:[%s248 + $0x598] sm:$0xff]
        %v490 = vld [vmem:[%s248 + $0x5a0] sm:$0xff]
        %v491 = vld [vmem:[%s248 + $0x5a8] sm:$0xff]
        %v492 = vld [vmem:[%s248 + $0x5b0] sm:$0xff]
        %v493 = vld [vmem:[%s248 + $0x5b8] sm:$0xff]
        %v494 = vld [vmem:[%s248 + $0x5c0] sm:$0xff]
        %v495 = vld [vmem:[%s248 + $0x5c8] sm:$0xff]
        %v496 = vld [vmem:[%s248 + $0x5d0] sm:$0xff]
        %v497 = vld [vmem:[%s248 + $0x5d8] sm:$0xff]
        %v498 = vld [vmem:[%s248 + $0x5e0] sm:$0xff]
        %v499 = vld [vmem:[%s248 + $0x5e8] sm:$0xff]
        %v500 = vld [vmem:[%s248 + $0x5f0] sm:$0xff]
        %v501 = vld [vmem:[%s248 + $0x5f8] sm:$0xff]
        %v502 = vld [vmem:[%s248 + $0x600] sm:$0xff]
        %v503 = vld [vmem:[%s248 + $0x608] sm:$0xff]
        %v504 = vld [vmem:[%s248 + $0x610] sm:$0xff]
        %v505 = vld [vmem:[%s248 + $0x618] sm:$0xff]
        %v506 = vld [vmem:[%s248 + $0x620] sm:$0xff]
        %v507 = vld [vmem:[%s248 + $0x628] sm:$0xff]
        %v508 = vld [vmem:[%s248 + $0x630] sm:$0xff]
        %v509 = vld [vmem:[%s248 + $0x638] sm:$0xff]
        %v510 = vld [vmem:[%s248 + $0x640] sm:$0xff]
        %v511 = vld [vmem:[%s248 + $0x648] sm:$0xff]
        %v512 = vld [vmem:[%s248 + $0x650] sm:$0xff]
        %v513 = vld [vmem:[%s248 + $0x658] sm:$0xff]
        %v514 = vld [vmem:[%s248 + $0x660] sm:$0xff]
        %v515 = vld [vmem:[%s248 + $0x668] sm:$0xff]
        %v516 = vld [vmem:[%s248 + $0x670] sm:$0xff]
        %v517 = vld [vmem:[%s248 + $0x678] sm:$0xff]
        %v518 = vld [vmem:[%s248 + $0x680] sm:$0xff]
        %v519 = vld [vmem:[%s248 + $0x688] sm:$0xff]
        %v520 = vld [vmem:[%s248 + $0x690] sm:$0xff]
        %v521 = vld [vmem:[%s248 + $0x698] sm:$0xff]
        %v522 = vld [vmem:[%s248 + $0x6a0] sm:$0xff]
        %v523 = vld [vmem:[%s248 + $0x6a8] sm:$0xff]
        %v524 = vld [vmem:[%s248 + $0x6b0] sm:$0xff]
        %v525 = vld [vmem:[%s248 + $0x6b8] sm:$0xff]
        %v526 = vld [vmem:[%s248 + $0x6c0] sm:$0xff]
        %v527 = vld [vmem:[%s248 + $0x6c8] sm:$0xff]
        %v528 = vld [vmem:[%s248 + $0x6d0] sm:$0xff]
        %v529 = vld [vmem:[%s248 + $0x6d8] sm:$0xff]
        %v530 = vld [vmem:[%s248 + $0x6e0] sm:$0xff]
        %v531 = vld [vmem:[%s248 + $0x6e8] sm:$0xff]
        %v532 = vld [vmem:[%s248 + $0x6f0] sm:$0xff]
        %v533 = vld [vmem:[%s248 + $0x6f8] sm:$0xff]
        %v534 = vld [vmem:[%s248 + $0x700] sm:$0xff]
        %v535 = vld [vmem:[%s248 + $0x708] sm:$0xff]
        %v536 = vld [vmem:[%s248 + $0x710] sm:$0xff]
        %v537 = vld [vmem:[%s248 + $0x718] sm:$0xff]
        %v538 = vld [vmem:[%s248 + $0x720] sm:$0xff]
        %v539 = vld [vmem:[%s248 + $0x728] sm:$0xff]
        %v540 = vld [vmem:[%s248 + $0x730] sm:$0xff]
        %v541 = vld [vmem:[%s248 + $0x738] sm:$0xff]
        %v542 = vld [vmem:[%s248 + $0x740] sm:$0xff]
        %v543 = vld [vmem:[%s248 + $0x748] sm:$0xff]
        %v544 = vld [vmem:[%s248 + $0x750] sm:$0xff]
        %v545 = vld [vmem:[%s248 + $0x758] sm:$0xff]
        %v546 = vld [vmem:[%s248 + $0x760] sm:$0xff]
        %v547 = vld [vmem:[%s248 + $0x768] sm:$0xff]
        %v548 = vld [vmem:[%s248 + $0x770] sm:$0xff]
        %v549 = vld [vmem:[%s248 + $0x778] sm:$0xff]
        %v550 = vld [vmem:[%s248 + $0x780] sm:$0xff]
        %v551 = vld [vmem:[%s248 + $0x788] sm:$0xff]
        %v552 = vld [vmem:[%s248 + $0x790] sm:$0xff]
        %v553 = vld [vmem:[%s248 + $0x798] sm:$0xff]
        %v554 = vld [vmem:[%s248 + $0x7a0] sm:$0xff]
        %v555 = vld [vmem:[%s248 + $0x7a8] sm:$0xff]
        %v556 = vld [vmem:[%s248 + $0x7b0] sm:$0xff]
        %v557 = vld [vmem:[%s248 + $0x7b8] sm:$0xff]
        %v558 = vld [vmem:[%s248 + $0x7c0] sm:$0xff]
        %v559 = vld [vmem:[%s248 + $0x7c8] sm:$0xff]
        %v560 = vld [vmem:[%s248 + $0x7d0] sm:$0xff]
        %v561 = vld [vmem:[%s248 + $0x7d8] sm:$0xff]
        %v562 = vld [vmem:[%s248 + $0x7e0] sm:$0xff]
        %v563 = vld [vmem:[%s248 + $0x7e8] sm:$0xff]
        %v564 = vld [vmem:[%s248 + $0x7f0] sm:$0xff]
        %v565 = vld [vmem:[%s248 + $0x7f8] sm:$0xff]
        %v568 = vunpack.c.l.b16 %v308
        %v569 = vunpack.c.h.b16 %v308
        %v570 = vunpack.c.l.b16 %v309
        %v571 = vunpack.c.h.b16 %v309
        %v572 = vpack.c.b16 %v568, %v568
        %v573 = vpack.c.b16 %v569, %v569
        %v574 = vpack.c.b16 %v570, %v570
        %v575 = vpack.c.b16 %v571, %v571
        %v836 = vunpack.c.l.b16 %v310
        %v837 = vunpack.c.h.b16 %v310
        %v838 = vunpack.c.l.b16 %v311
        %v839 = vunpack.c.h.b16 %v311
        %v840 = vunpack.c.l.b16 %v312
        %v841 = vunpack.c.h.b16 %v312
        %v842 = vunpack.c.l.b16 %v313
        %v843 = vunpack.c.h.b16 %v313
        %v844 = vunpack.c.l.b16 %v314
        %v845 = vunpack.c.h.b16 %v314
        %v846 = vunpack.c.l.b16 %v315
        %v847 = vunpack.c.h.b16 %v315
        %v848 = vunpack.c.l.b16 %v316
        %v849 = vunpack.c.h.b16 %v316
        %v850 = vunpack.c.l.b16 %v317
        %v851 = vunpack.c.h.b16 %v317
        %v852 = vunpack.c.l.b16 %v318
        %v853 = vunpack.c.h.b16 %v318
        %v854 = vunpack.c.l.b16 %v319
        %v855 = vunpack.c.h.b16 %v319
        %v856 = vunpack.c.l.b16 %v320
        %v857 = vunpack.c.h.b16 %v320
        %v858 = vunpack.c.l.b16 %v321
        %v859 = vunpack.c.h.b16 %v321
        %v860 = vunpack.c.l.b16 %v322
        %v861 = vunpack.c.h.b16 %v322
        %v862 = vunpack.c.l.b16 %v323
        %v863 = vunpack.c.h.b16 %v323
        %v864 = vunpack.c.l.b16 %v324
        %v865 = vunpack.c.h.b16 %v324
        %v866 = vunpack.c.l.b16 %v325
        %v867 = vunpack.c.h.b16 %v325
        %v868 = vunpack.c.l.b16 %v326
        %v869 = vunpack.c.h.b16 %v326
        %v870 = vunpack.c.l.b16 %v327
        %v871 = vunpack.c.h.b16 %v327
        %v872 = vunpack.c.l.b16 %v328
        %v873 = vunpack.c.h.b16 %v328
        %v874 = vunpack.c.l.b16 %v329
        %v875 = vunpack.c.h.b16 %v329
        %v876 = vunpack.c.l.b16 %v330
        %v877 = vunpack.c.h.b16 %v330
        %v878 = vunpack.c.l.b16 %v331
        %v879 = vunpack.c.h.b16 %v331
        %v880 = vunpack.c.l.b16 %v332
        %v881 = vunpack.c.h.b16 %v332
        %v882 = vunpack.c.l.b16 %v333
        %v883 = vunpack.c.h.b16 %v333
        %v884 = vunpack.c.l.b16 %v334
        %v885 = vunpack.c.h.b16 %v334
        %v886 = vunpack.c.l.b16 %v335
        %v887 = vunpack.c.h.b16 %v335
        %v888 = vunpack.c.l.b16 %v336
        %v889 = vunpack.c.h.b16 %v336
        %v890 = vunpack.c.l.b16 %v337
        %v891 = vunpack.c.h.b16 %v337
        %v892 = vunpack.c.l.b16 %v338
        %v893 = vunpack.c.h.b16 %v338
        %v894 = vunpack.c.l.b16 %v339
        %v895 = vunpack.c.h.b16 %v339
        %v896 = vunpack.c.l.b16 %v340
        %v897 = vunpack.c.h.b16 %v340
        %v898 = vunpack.c.l.b16 %v341
        %v899 = vunpack.c.h.b16 %v341
        %v900 = vunpack.c.l.b16 %v342
        %v901 = vunpack.c.h.b16 %v342
        %v902 = vunpack.c.l.b16 %v343
        %v903 = vunpack.c.h.b16 %v343
        %v904 = vunpack.c.l.b16 %v344
        %v905 = vunpack.c.h.b16 %v344
        %v906 = vunpack.c.l.b16 %v345
        %v907 = vunpack.c.h.b16 %v345
        %v908 = vunpack.c.l.b16 %v346
        %v909 = vunpack.c.h.b16 %v346
        %v910 = vunpack.c.l.b16 %v347
        %v911 = vunpack.c.h.b16 %v347
        %v912 = vunpack.c.l.b16 %v348
        %v913 = vunpack.c.h.b16 %v348
        %v914 = vunpack.c.l.b16 %v349
        %v915 = vunpack.c.h.b16 %v349
        %v916 = vunpack.c.l.b16 %v350
        %v917 = vunpack.c.h.b16 %v350
        %v918 = vunpack.c.l.b16 %v351
        %v919 = vunpack.c.h.b16 %v351
        %v920 = vunpack.c.l.b16 %v352
        %v921 = vunpack.c.h.b16 %v352
        %v922 = vunpack.c.l.b16 %v353
        %v923 = vunpack.c.h.b16 %v353
        %v924 = vunpack.c.l.b16 %v354
        %v925 = vunpack.c.h.b16 %v354
        %v926 = vunpack.c.l.b16 %v355
        %v927 = vunpack.c.h.b16 %v355
        %v928 = vunpack.c.l.b16 %v356
        %v929 = vunpack.c.h.b16 %v356
        %v930 = vunpack.c.l.b16 %v357
        %v931 = vunpack.c.h.b16 %v357
        %v932 = vunpack.c.l.b16 %v358
        %v933 = vunpack.c.h.b16 %v358
        %v934 = vunpack.c.l.b16 %v359
        %v935 = vunpack.c.h.b16 %v359
        %v936 = vunpack.c.l.b16 %v360
        %v937 = vunpack.c.h.b16 %v360
        %v938 = vunpack.c.l.b16 %v361
        %v939 = vunpack.c.h.b16 %v361
        %v940 = vunpack.c.l.b16 %v362
        %v941 = vunpack.c.h.b16 %v362
        %v942 = vunpack.c.l.b16 %v363
        %v943 = vunpack.c.h.b16 %v363
        %v944 = vunpack.c.l.b16 %v364
        %v945 = vunpack.c.h.b16 %v364
        %v946 = vunpack.c.l.b16 %v365
        %v947 = vunpack.c.h.b16 %v365
        %v948 = vunpack.c.l.b16 %v366
        %v949 = vunpack.c.h.b16 %v366
        %v950 = vunpack.c.l.b16 %v367
        %v951 = vunpack.c.h.b16 %v367
        %v952 = vunpack.c.l.b16 %v368
        %v953 = vunpack.c.h.b16 %v368
        %v954 = vunpack.c.l.b16 %v369
        %v955 = vunpack.c.h.b16 %v369
        %v956 = vunpack.c.l.b16 %v370
        %v957 = vunpack.c.h.b16 %v370
        %v958 = vunpack.c.l.b16 %v371
        %v959 = vunpack.c.h.b16 %v371
        %v960 = vunpack.c.l.b16 %v372
        %v961 = vunpack.c.h.b16 %v372
        %v962 = vunpack.c.l.b16 %v373
        %v963 = vunpack.c.h.b16 %v373
        %v964 = vunpack.c.l.b16 %v374
        %v965 = vunpack.c.h.b16 %v374
        %v966 = vunpack.c.l.b16 %v375
        %v967 = vunpack.c.h.b16 %v375
        %v968 = vunpack.c.l.b16 %v376
        %v969 = vunpack.c.h.b16 %v376
        %v970 = vunpack.c.l.b16 %v377
        %v971 = vunpack.c.h.b16 %v377
        %v972 = vunpack.c.l.b16 %v378
        %v973 = vunpack.c.h.b16 %v378
        %v974 = vunpack.c.l.b16 %v379
        %v975 = vunpack.c.h.b16 %v379
        %v976 = vunpack.c.l.b16 %v380
        %v977 = vunpack.c.h.b16 %v380
        %v978 = vunpack.c.l.b16 %v381
        %v979 = vunpack.c.h.b16 %v381
        %v980 = vunpack.c.l.b16 %v382
        %v981 = vunpack.c.h.b16 %v382
        %v982 = vunpack.c.l.b16 %v383
        %v983 = vunpack.c.h.b16 %v383
        %v984 = vunpack.c.l.b16 %v384
        %v985 = vunpack.c.h.b16 %v384
        %v986 = vunpack.c.l.b16 %v385
        %v987 = vunpack.c.h.b16 %v385
        %v988 = vunpack.c.l.b16 %v386
        %v989 = vunpack.c.h.b16 %v386
        %v990 = vunpack.c.l.b16 %v387
        %v991 = vunpack.c.h.b16 %v387
        %v992 = vunpack.c.l.b16 %v388
        %v993 = vunpack.c.h.b16 %v388
        %v994 = vunpack.c.l.b16 %v389
        %v995 = vunpack.c.h.b16 %v389
        %v996 = vunpack.c.l.b16 %v390
        %v997 = vunpack.c.h.b16 %v390
        %v998 = vunpack.c.l.b16 %v391
        %v999 = vunpack.c.h.b16 %v391
        %v1000 = vunpack.c.l.b16 %v392
        %v1001 = vunpack.c.h.b16 %v392
        %v1002 = vunpack.c.l.b16 %v393
        %v1003 = vunpack.c.h.b16 %v393
        %v1004 = vunpack.c.l.b16 %v394
        %v1005 = vunpack.c.h.b16 %v394
        %v1006 = vunpack.c.l.b16 %v395
        %v1007 = vunpack.c.h.b16 %v395
        %v1008 = vunpack.c.l.b16 %v396
        %v1009 = vunpack.c.h.b16 %v396
        %v1010 = vunpack.c.l.b16 %v397
        %v1011 = vunpack.c.h.b16 %v397
        %v1012 = vunpack.c.l.b16 %v398
        %v1013 = vunpack.c.h.b16 %v398
        %v1014 = vunpack.c.l.b16 %v399
        %v1015 = vunpack.c.h.b16 %v399
        %v1016 = vunpack.c.l.b16 %v400
        %v1017 = vunpack.c.h.b16 %v400
        %v1018 = vunpack.c.l.b16 %v401
        %v1019 = vunpack.c.h.b16 %v401
        %v1020 = vunpack.c.l.b16 %v402
        %v1021 = vunpack.c.h.b16 %v402
        %v1022 = vunpack.c.l.b16 %v403
        %v1023 = vunpack.c.h.b16 %v403
        %v1024 = vunpack.c.l.b16 %v404
        %v1025 = vunpack.c.h.b16 %v404
        %v1026 = vunpack.c.l.b16 %v405
        %v1027 = vunpack.c.h.b16 %v405
        %v1028 = vunpack.c.l.b16 %v406
        %v1029 = vunpack.c.h.b16 %v406
        %v1030 = vunpack.c.l.b16 %v407
        %v1031 = vunpack.c.h.b16 %v407
        %v1032 = vunpack.c.l.b16 %v408
        %v1033 = vunpack.c.h.b16 %v408
        %v1034 = vunpack.c.l.b16 %v409
        %v1035 = vunpack.c.h.b16 %v409
        %v1036 = vunpack.c.l.b16 %v410
        %v1037 = vunpack.c.h.b16 %v410
        %v1038 = vunpack.c.l.b16 %v411
        %v1039 = vunpack.c.h.b16 %v411
        %v1040 = vunpack.c.l.b16 %v412
        %v1041 = vunpack.c.h.b16 %v412
        %v1042 = vunpack.c.l.b16 %v413
        %v1043 = vunpack.c.h.b16 %v413
        %v1044 = vunpack.c.l.b16 %v414
        %v1045 = vunpack.c.h.b16 %v414
        %v1046 = vunpack.c.l.b16 %v415
        %v1047 = vunpack.c.h.b16 %v415
        %v1048 = vunpack.c.l.b16 %v416
        %v1049 = vunpack.c.h.b16 %v416
        %v1050 = vunpack.c.l.b16 %v417
        %v1051 = vunpack.c.h.b16 %v417
        %v1052 = vunpack.c.l.b16 %v418
        %v1053 = vunpack.c.h.b16 %v418
        %v1054 = vunpack.c.l.b16 %v419
        %v1055 = vunpack.c.h.b16 %v419
        %v1056 = vunpack.c.l.b16 %v420
        %v1057 = vunpack.c.h.b16 %v420
        %v1058 = vunpack.c.l.b16 %v421
        %v1059 = vunpack.c.h.b16 %v421
        %v1060 = vunpack.c.l.b16 %v422
        %v1061 = vunpack.c.h.b16 %v422
        %v1062 = vunpack.c.l.b16 %v423
        %v1063 = vunpack.c.h.b16 %v423
        %v1064 = vunpack.c.l.b16 %v424
        %v1065 = vunpack.c.h.b16 %v424
        %v1066 = vunpack.c.l.b16 %v425
        %v1067 = vunpack.c.h.b16 %v425
        %v1068 = vunpack.c.l.b16 %v426
        %v1069 = vunpack.c.h.b16 %v426
        %v1070 = vunpack.c.l.b16 %v427
        %v1071 = vunpack.c.h.b16 %v427
        %v1072 = vunpack.c.l.b16 %v428
        %v1073 = vunpack.c.h.b16 %v428
        %v1074 = vunpack.c.l.b16 %v429
        %v1075 = vunpack.c.h.b16 %v429
        %v1076 = vunpack.c.l.b16 %v430
        %v1077 = vunpack.c.h.b16 %v430
        %v1078 = vunpack.c.l.b16 %v431
        %v1079 = vunpack.c.h.b16 %v431
        %v1080 = vunpack.c.l.b16 %v432
        %v1081 = vunpack.c.h.b16 %v432
        %v1082 = vunpack.c.l.b16 %v433
        %v1083 = vunpack.c.h.b16 %v433
        %v1084 = vunpack.c.l.b16 %v434
        %v1085 = vunpack.c.h.b16 %v434
        %v1086 = vunpack.c.l.b16 %v435
        %v1087 = vunpack.c.h.b16 %v435
        %v1088 = vunpack.c.l.b16 %v436
        %v1089 = vunpack.c.h.b16 %v436
        %v1090 = vunpack.c.l.b16 %v437
        %v1091 = vunpack.c.h.b16 %v437
        %v1092 = vunpack.c.l.b16 %v438
        %v1093 = vunpack.c.h.b16 %v438
        %v1094 = vunpack.c.l.b16 %v439
        %v1095 = vunpack.c.h.b16 %v439
        %v1096 = vunpack.c.l.b16 %v440
        %v1097 = vunpack.c.h.b16 %v440
        %v1098 = vunpack.c.l.b16 %v441
        %v1099 = vunpack.c.h.b16 %v441
        %v1100 = vunpack.c.l.b16 %v442
        %v1101 = vunpack.c.h.b16 %v442
        %v1102 = vunpack.c.l.b16 %v443
        %v1103 = vunpack.c.h.b16 %v443
        %v1104 = vunpack.c.l.b16 %v444
        %v1105 = vunpack.c.h.b16 %v444
        %v1106 = vunpack.c.l.b16 %v445
        %v1107 = vunpack.c.h.b16 %v445
        %v1108 = vunpack.c.l.b16 %v446
        %v1109 = vunpack.c.h.b16 %v446
        %v1110 = vunpack.c.l.b16 %v447
        %v1111 = vunpack.c.h.b16 %v447
        %v1112 = vunpack.c.l.b16 %v448
        %v1113 = vunpack.c.h.b16 %v448
        %v1114 = vunpack.c.l.b16 %v449
        %v1115 = vunpack.c.h.b16 %v449
        %v1116 = vunpack.c.l.b16 %v450
        %v1117 = vunpack.c.h.b16 %v450
        %v1118 = vunpack.c.l.b16 %v451
        %v1119 = vunpack.c.h.b16 %v451
        %v1120 = vunpack.c.l.b16 %v452
        %v1121 = vunpack.c.h.b16 %v452
        %v1122 = vunpack.c.l.b16 %v453
        %v1123 = vunpack.c.h.b16 %v453
        %v1124 = vunpack.c.l.b16 %v454
        %v1125 = vunpack.c.h.b16 %v454
        %v1126 = vunpack.c.l.b16 %v455
        %v1127 = vunpack.c.h.b16 %v455
        %v1128 = vunpack.c.l.b16 %v456
        %v1129 = vunpack.c.h.b16 %v456
        %v1130 = vunpack.c.l.b16 %v457
        %v1131 = vunpack.c.h.b16 %v457
        %v1132 = vunpack.c.l.b16 %v458
        %v1133 = vunpack.c.h.b16 %v458
        %v1134 = vunpack.c.l.b16 %v459
        %v1135 = vunpack.c.h.b16 %v459
        %v1136 = vunpack.c.l.b16 %v460
        %v1137 = vunpack.c.h.b16 %v460
        %v1138 = vunpack.c.l.b16 %v461
        %v1139 = vunpack.c.h.b16 %v461
        %v1140 = vunpack.c.l.b16 %v462
        %v1141 = vunpack.c.h.b16 %v462
        %v1142 = vunpack.c.l.b16 %v463
        %v1143 = vunpack.c.h.b16 %v463
        %v1144 = vunpack.c.l.b16 %v464
        %v1145 = vunpack.c.h.b16 %v464
        %v1146 = vunpack.c.l.b16 %v465
        %v1147 = vunpack.c.h.b16 %v465
        %v1148 = vunpack.c.l.b16 %v466
        %v1149 = vunpack.c.h.b16 %v466
        %v1150 = vunpack.c.l.b16 %v467
        %v1151 = vunpack.c.h.b16 %v467
        %v1152 = vunpack.c.l.b16 %v468
        %v1153 = vunpack.c.h.b16 %v468
        %v1154 = vunpack.c.l.b16 %v469
        %v1155 = vunpack.c.h.b16 %v469
        %v1156 = vunpack.c.l.b16 %v470
        %v1157 = vunpack.c.h.b16 %v470
        %v1158 = vunpack.c.l.b16 %v471
        %v1159 = vunpack.c.h.b16 %v471
        %v1160 = vunpack.c.l.b16 %v472
        %v1161 = vunpack.c.h.b16 %v472
        %v1162 = vunpack.c.l.b16 %v473
        %v1163 = vunpack.c.h.b16 %v473
        %v1164 = vunpack.c.l.b16 %v474
        %v1165 = vunpack.c.h.b16 %v474
        %v1166 = vunpack.c.l.b16 %v475
        %v1167 = vunpack.c.h.b16 %v475
        %v1168 = vunpack.c.l.b16 %v476
        %v1169 = vunpack.c.h.b16 %v476
        %v1170 = vunpack.c.l.b16 %v477
        %v1171 = vunpack.c.h.b16 %v477
        %v1172 = vunpack.c.l.b16 %v478
        %v1173 = vunpack.c.h.b16 %v478
        %v1174 = vunpack.c.l.b16 %v479
        %v1175 = vunpack.c.h.b16 %v479
        %v1176 = vunpack.c.l.b16 %v480
        %v1177 = vunpack.c.h.b16 %v480
        %v1178 = vunpack.c.l.b16 %v481
        %v1179 = vunpack.c.h.b16 %v481
        %v1180 = vunpack.c.l.b16 %v482
        %v1181 = vunpack.c.h.b16 %v482
        %v1182 = vunpack.c.l.b16 %v483
        %v1183 = vunpack.c.h.b16 %v483
        %v1184 = vunpack.c.l.b16 %v484
        %v1185 = vunpack.c.h.b16 %v484
        %v1186 = vunpack.c.l.b16 %v485
        %v1187 = vunpack.c.h.b16 %v485
        %v1188 = vunpack.c.l.b16 %v486
        %v1189 = vunpack.c.h.b16 %v486
        %v1190 = vunpack.c.l.b16 %v487
        %v1191 = vunpack.c.h.b16 %v487
        %v1192 = vunpack.c.l.b16 %v488
        %v1193 = vunpack.c.h.b16 %v488
        %v1194 = vunpack.c.l.b16 %v489
        %v1195 = vunpack.c.h.b16 %v489
        %v1196 = vunpack.c.l.b16 %v490
        %v1197 = vunpack.c.h.b16 %v490
        %v1198 = vunpack.c.l.b16 %v491
        %v1199 = vunpack.c.h.b16 %v491
        %v1200 = vunpack.c.l.b16 %v492
        %v1201 = vunpack.c.h.b16 %v492
        %v1202 = vunpack.c.l.b16 %v493
        %v1203 = vunpack.c.h.b16 %v493
        %v1204 = vunpack.c.l.b16 %v494
        %v1205 = vunpack.c.h.b16 %v494
        %v1206 = vunpack.c.l.b16 %v495
        %v1207 = vunpack.c.h.b16 %v495
        %v1208 = vunpack.c.l.b16 %v496
        %v1209 = vunpack.c.h.b16 %v496
        %v1210 = vunpack.c.l.b16 %v497
        %v1211 = vunpack.c.h.b16 %v497
        %v1212 = vunpack.c.l.b16 %v498
        %v1213 = vunpack.c.h.b16 %v498
        %v1214 = vunpack.c.l.b16 %v499
        %v1215 = vunpack.c.h.b16 %v499
        %v1216 = vunpack.c.l.b16 %v500
        %v1217 = vunpack.c.h.b16 %v500
        %v1218 = vunpack.c.l.b16 %v501
        %v1219 = vunpack.c.h.b16 %v501
        %v1220 = vunpack.c.l.b16 %v502
        %v1221 = vunpack.c.h.b16 %v502
        %v1222 = vunpack.c.l.b16 %v503
        %v1223 = vunpack.c.h.b16 %v503
        %v1224 = vunpack.c.l.b16 %v504
        %v1225 = vunpack.c.h.b16 %v504
        %v1226 = vunpack.c.l.b16 %v505
        %v1227 = vunpack.c.h.b16 %v505
        %v1228 = vunpack.c.l.b16 %v506
        %v1229 = vunpack.c.h.b16 %v506
        %v1230 = vunpack.c.l.b16 %v507
        %v1231 = vunpack.c.h.b16 %v507
        %v1232 = vunpack.c.l.b16 %v508
        %v1233 = vunpack.c.h.b16 %v508
        %v1234 = vunpack.c.l.b16 %v509
        %v1235 = vunpack.c.h.b16 %v509
        %v1236 = vunpack.c.l.b16 %v510
        %v1237 = vunpack.c.h.b16 %v510
        %v1238 = vunpack.c.l.b16 %v511
        %v1239 = vunpack.c.h.b16 %v511
        %v1240 = vunpack.c.l.b16 %v512
        %v1241 = vunpack.c.h.b16 %v512
        %v1242 = vunpack.c.l.b16 %v513
        %v1243 = vunpack.c.h.b16 %v513
        %v1244 = vunpack.c.l.b16 %v514
        %v1245 = vunpack.c.h.b16 %v514
        %v1246 = vunpack.c.l.b16 %v515
        %v1247 = vunpack.c.h.b16 %v515
        %v1248 = vunpack.c.l.b16 %v516
        %v1249 = vunpack.c.h.b16 %v516
        %v1250 = vunpack.c.l.b16 %v517
        %v1251 = vunpack.c.h.b16 %v517
        %v1252 = vunpack.c.l.b16 %v518
        %v1253 = vunpack.c.h.b16 %v518
        %v1254 = vunpack.c.l.b16 %v519
        %v1255 = vunpack.c.h.b16 %v519
        %v1256 = vunpack.c.l.b16 %v520
        %v1257 = vunpack.c.h.b16 %v520
        %v1258 = vunpack.c.l.b16 %v521
        %v1259 = vunpack.c.h.b16 %v521
        %v1260 = vunpack.c.l.b16 %v522
        %v1261 = vunpack.c.h.b16 %v522
        %v1262 = vunpack.c.l.b16 %v523
        %v1263 = vunpack.c.h.b16 %v523
        %v1264 = vunpack.c.l.b16 %v524
        %v1265 = vunpack.c.h.b16 %v524
        %v1266 = vunpack.c.l.b16 %v525
        %v1267 = vunpack.c.h.b16 %v525
        %v1268 = vunpack.c.l.b16 %v526
        %v1269 = vunpack.c.h.b16 %v526
        %v1270 = vunpack.c.l.b16 %v527
        %v1271 = vunpack.c.h.b16 %v527
        %v1272 = vunpack.c.l.b16 %v528
        %v1273 = vunpack.c.h.b16 %v528
        %v1274 = vunpack.c.l.b16 %v529
        %v1275 = vunpack.c.h.b16 %v529
        %v1276 = vunpack.c.l.b16 %v530
        %v1277 = vunpack.c.h.b16 %v530
        %v1278 = vunpack.c.l.b16 %v531
        %v1279 = vunpack.c.h.b16 %v531
        %v1280 = vunpack.c.l.b16 %v532
        %v1281 = vunpack.c.h.b16 %v532
        %v1282 = vunpack.c.l.b16 %v533
        %v1283 = vunpack.c.h.b16 %v533
        %v1284 = vunpack.c.l.b16 %v534
        %v1285 = vunpack.c.h.b16 %v534
        %v1286 = vunpack.c.l.b16 %v535
        %v1287 = vunpack.c.h.b16 %v535
        %v1288 = vunpack.c.l.b16 %v536
        %v1289 = vunpack.c.h.b16 %v536
        %v1290 = vunpack.c.l.b16 %v537
        %v1291 = vunpack.c.h.b16 %v537
        %v1292 = vunpack.c.l.b16 %v538
        %v1293 = vunpack.c.h.b16 %v538
        %v1294 = vunpack.c.l.b16 %v539
        %v1295 = vunpack.c.h.b16 %v539
        %v1296 = vunpack.c.l.b16 %v540
        %v1297 = vunpack.c.h.b16 %v540
        %v1298 = vunpack.c.l.b16 %v541
        %v1299 = vunpack.c.h.b16 %v541
        %v1300 = vunpack.c.l.b16 %v542
        %v1301 = vunpack.c.h.b16 %v542
        %v1302 = vunpack.c.l.b16 %v543
        %v1303 = vunpack.c.h.b16 %v543
        %v1304 = vunpack.c.l.b16 %v544
        %v1305 = vunpack.c.h.b16 %v544
        %v1306 = vunpack.c.l.b16 %v545
        %v1307 = vunpack.c.h.b16 %v545
        %v1308 = vunpack.c.l.b16 %v546
        %v1309 = vunpack.c.h.b16 %v546
        %v1310 = vunpack.c.l.b16 %v547
        %v1311 = vunpack.c.h.b16 %v547
        %v1312 = vunpack.c.l.b16 %v548
        %v1313 = vunpack.c.h.b16 %v548
        %v1314 = vunpack.c.l.b16 %v549
        %v1315 = vunpack.c.h.b16 %v549
        %v1316 = vunpack.c.l.b16 %v550
        %v1317 = vunpack.c.h.b16 %v550
        %v1318 = vunpack.c.l.b16 %v551
        %v1319 = vunpack.c.h.b16 %v551
        %v1320 = vunpack.c.l.b16 %v552
        %v1321 = vunpack.c.h.b16 %v552
        %v1322 = vunpack.c.l.b16 %v553
        %v1323 = vunpack.c.h.b16 %v553
        %v1324 = vunpack.c.l.b16 %v554
        %v1325 = vunpack.c.h.b16 %v554
        %v1326 = vunpack.c.l.b16 %v555
        %v1327 = vunpack.c.h.b16 %v555
        %v1328 = vunpack.c.l.b16 %v556
        %v1329 = vunpack.c.h.b16 %v556
        %v1330 = vunpack.c.l.b16 %v557
        %v1331 = vunpack.c.h.b16 %v557
        %v1332 = vunpack.c.l.b16 %v558
        %v1333 = vunpack.c.h.b16 %v558
        %v1334 = vunpack.c.l.b16 %v559
        %v1335 = vunpack.c.h.b16 %v559
        %v1336 = vunpack.c.l.b16 %v560
        %v1337 = vunpack.c.h.b16 %v560
        %v1338 = vunpack.c.l.b16 %v561
        %v1339 = vunpack.c.h.b16 %v561
        %v1340 = vunpack.c.l.b16 %v562
        %v1341 = vunpack.c.h.b16 %v562
        %v1342 = vunpack.c.l.b16 %v563
        %v1343 = vunpack.c.h.b16 %v563
        %v1344 = vunpack.c.l.b16 %v564
        %v1345 = vunpack.c.h.b16 %v564
        %v1346 = vunpack.c.l.b16 %v565
        %v1347 = vunpack.c.h.b16 %v565
        %v1348 = vpack.c.b16 %v844, %v836
        %v1349 = vpack.c.b16 %v845, %v837
        %v1350 = vpack.c.b16 %v846, %v838
        %v1351 = vpack.c.b16 %v847, %v839
        %v1352 = vpack.c.b16 %v848, %v840
        %v1353 = vpack.c.b16 %v849, %v841
        %v1354 = vpack.c.b16 %v850, %v842
        %v1355 = vpack.c.b16 %v851, %v843
        %v1356 = vpack.c.b16 %v860, %v852
        %v1357 = vpack.c.b16 %v861, %v853
        %v1358 = vpack.c.b16 %v862, %v854
        %v1359 = vpack.c.b16 %v863, %v855
        %v1360 = vpack.c.b16 %v864, %v856
        %v1361 = vpack.c.b16 %v865, %v857
        %v1362 = vpack.c.b16 %v866, %v858
        %v1363 = vpack.c.b16 %v867, %v859
        %v1364 = vpack.c.b16 %v876, %v868
        %v1365 = vpack.c.b16 %v877, %v869
        %v1366 = vpack.c.b16 %v878, %v870
        %v1367 = vpack.c.b16 %v879, %v871
        %v1368 = vpack.c.b16 %v880, %v872
        %v1369 = vpack.c.b16 %v881, %v873
        %v1370 = vpack.c.b16 %v882, %v874
        %v1371 = vpack.c.b16 %v883, %v875
        %v1372 = vpack.c.b16 %v892, %v884
        %v1373 = vpack.c.b16 %v893, %v885
        %v1374 = vpack.c.b16 %v894, %v886
        %v1375 = vpack.c.b16 %v895, %v887
        %v1376 = vpack.c.b16 %v896, %v888
        %v1377 = vpack.c.b16 %v897, %v889
        %v1378 = vpack.c.b16 %v898, %v890
        %v1379 = vpack.c.b16 %v899, %v891
        %v1380 = vpack.c.b16 %v908, %v900
        %v1381 = vpack.c.b16 %v909, %v901
        %v1382 = vpack.c.b16 %v910, %v902
        %v1383 = vpack.c.b16 %v911, %v903
        %v1384 = vpack.c.b16 %v912, %v904
        %v1385 = vpack.c.b16 %v913, %v905
        %v1386 = vpack.c.b16 %v914, %v906
        %v1387 = vpack.c.b16 %v915, %v907
        %v1388 = vpack.c.b16 %v924, %v916
        %v1389 = vpack.c.b16 %v925, %v917
        %v1390 = vpack.c.b16 %v926, %v918
        %v1391 = vpack.c.b16 %v927, %v919
        %v1392 = vpack.c.b16 %v928, %v920
        %v1393 = vpack.c.b16 %v929, %v921
        %v1394 = vpack.c.b16 %v930, %v922
        %v1395 = vpack.c.b16 %v931, %v923
        %v1396 = vpack.c.b16 %v940, %v932
        %v1397 = vpack.c.b16 %v941, %v933
        %v1398 = vpack.c.b16 %v942, %v934
        %v1399 = vpack.c.b16 %v943, %v935
        %v1400 = vpack.c.b16 %v944, %v936
        %v1401 = vpack.c.b16 %v945, %v937
        %v1402 = vpack.c.b16 %v946, %v938
        %v1403 = vpack.c.b16 %v947, %v939
        %v1404 = vpack.c.b16 %v956, %v948
        %v1405 = vpack.c.b16 %v957, %v949
        %v1406 = vpack.c.b16 %v958, %v950
        %v1407 = vpack.c.b16 %v959, %v951
        %v1408 = vpack.c.b16 %v960, %v952
        %v1409 = vpack.c.b16 %v961, %v953
        %v1410 = vpack.c.b16 %v962, %v954
        %v1411 = vpack.c.b16 %v963, %v955
        %v1412 = vpack.c.b16 %v972, %v964
        %v1413 = vpack.c.b16 %v973, %v965
        %v1414 = vpack.c.b16 %v974, %v966
        %v1415 = vpack.c.b16 %v975, %v967
        %v1416 = vpack.c.b16 %v976, %v968
        %v1417 = vpack.c.b16 %v977, %v969
        %v1418 = vpack.c.b16 %v978, %v970
        %v1419 = vpack.c.b16 %v979, %v971
        %v1420 = vpack.c.b16 %v988, %v980
        %v1421 = vpack.c.b16 %v989, %v981
        %v1422 = vpack.c.b16 %v990, %v982
        %v1423 = vpack.c.b16 %v991, %v983
        %v1424 = vpack.c.b16 %v992, %v984
        %v1425 = vpack.c.b16 %v993, %v985
        %v1426 = vpack.c.b16 %v994, %v986
        %v1427 = vpack.c.b16 %v995, %v987
        %v1428 = vpack.c.b16 %v1004, %v996
        %v1429 = vpack.c.b16 %v1005, %v997
        %v1430 = vpack.c.b16 %v1006, %v998
        %v1431 = vpack.c.b16 %v1007, %v999
        %v1432 = vpack.c.b16 %v1008, %v1000
        %v1433 = vpack.c.b16 %v1009, %v1001
        %v1434 = vpack.c.b16 %v1010, %v1002
        %v1435 = vpack.c.b16 %v1011, %v1003
        %v1436 = vpack.c.b16 %v1020, %v1012
        %v1437 = vpack.c.b16 %v1021, %v1013
        %v1438 = vpack.c.b16 %v1022, %v1014
        %v1439 = vpack.c.b16 %v1023, %v1015
        %v1440 = vpack.c.b16 %v1024, %v1016
        %v1441 = vpack.c.b16 %v1025, %v1017
        %v1442 = vpack.c.b16 %v1026, %v1018
        %v1443 = vpack.c.b16 %v1027, %v1019
        %v1444 = vpack.c.b16 %v1036, %v1028
        %v1445 = vpack.c.b16 %v1037, %v1029
        %v1446 = vpack.c.b16 %v1038, %v1030
        %v1447 = vpack.c.b16 %v1039, %v1031
        %v1448 = vpack.c.b16 %v1040, %v1032
        %v1449 = vpack.c.b16 %v1041, %v1033
        %v1450 = vpack.c.b16 %v1042, %v1034
        %v1451 = vpack.c.b16 %v1043, %v1035
        %v1452 = vpack.c.b16 %v1052, %v1044
        %v1453 = vpack.c.b16 %v1053, %v1045
        %v1454 = vpack.c.b16 %v1054, %v1046
        %v1455 = vpack.c.b16 %v1055, %v1047
        %v1456 = vpack.c.b16 %v1056, %v1048
        %v1457 = vpack.c.b16 %v1057, %v1049
        %v1458 = vpack.c.b16 %v1058, %v1050
        %v1459 = vpack.c.b16 %v1059, %v1051
        %v1460 = vpack.c.b16 %v1068, %v1060
        %v1461 = vpack.c.b16 %v1069, %v1061
        %v1462 = vpack.c.b16 %v1070, %v1062
        %v1463 = vpack.c.b16 %v1071, %v1063
        %v1464 = vpack.c.b16 %v1072, %v1064
        %v1465 = vpack.c.b16 %v1073, %v1065
        %v1466 = vpack.c.b16 %v1074, %v1066
        %v1467 = vpack.c.b16 %v1075, %v1067
        %v1468 = vpack.c.b16 %v1084, %v1076
        %v1469 = vpack.c.b16 %v1085, %v1077
        %v1470 = vpack.c.b16 %v1086, %v1078
        %v1471 = vpack.c.b16 %v1087, %v1079
        %v1472 = vpack.c.b16 %v1088, %v1080
        %v1473 = vpack.c.b16 %v1089, %v1081
        %v1474 = vpack.c.b16 %v1090, %v1082
        %v1475 = vpack.c.b16 %v1091, %v1083
        %v1476 = vpack.c.b16 %v1100, %v1092
        %v1477 = vpack.c.b16 %v1101, %v1093
        %v1478 = vpack.c.b16 %v1102, %v1094
        %v1479 = vpack.c.b16 %v1103, %v1095
        %v1480 = vpack.c.b16 %v1104, %v1096
        %v1481 = vpack.c.b16 %v1105, %v1097
        %v1482 = vpack.c.b16 %v1106, %v1098
        %v1483 = vpack.c.b16 %v1107, %v1099
        %v1484 = vpack.c.b16 %v1116, %v1108
        %v1485 = vpack.c.b16 %v1117, %v1109
        %v1486 = vpack.c.b16 %v1118, %v1110
        %v1487 = vpack.c.b16 %v1119, %v1111
        %v1488 = vpack.c.b16 %v1120, %v1112
        %v1489 = vpack.c.b16 %v1121, %v1113
        %v1490 = vpack.c.b16 %v1122, %v1114
        %v1491 = vpack.c.b16 %v1123, %v1115
        %v1492 = vpack.c.b16 %v1132, %v1124
        %v1493 = vpack.c.b16 %v1133, %v1125
        %v1494 = vpack.c.b16 %v1134, %v1126
        %v1495 = vpack.c.b16 %v1135, %v1127
        %v1496 = vpack.c.b16 %v1136, %v1128
        %v1497 = vpack.c.b16 %v1137, %v1129
        %v1498 = vpack.c.b16 %v1138, %v1130
        %v1499 = vpack.c.b16 %v1139, %v1131
        %v1500 = vpack.c.b16 %v1148, %v1140
        %v1501 = vpack.c.b16 %v1149, %v1141
        %v1502 = vpack.c.b16 %v1150, %v1142
        %v1503 = vpack.c.b16 %v1151, %v1143
        %v1504 = vpack.c.b16 %v1152, %v1144
        %v1505 = vpack.c.b16 %v1153, %v1145
        %v1506 = vpack.c.b16 %v1154, %v1146
        %v1507 = vpack.c.b16 %v1155, %v1147
        %v1508 = vpack.c.b16 %v1164, %v1156
        %v1509 = vpack.c.b16 %v1165, %v1157
        %v1510 = vpack.c.b16 %v1166, %v1158
        %v1511 = vpack.c.b16 %v1167, %v1159
        %v1512 = vpack.c.b16 %v1168, %v1160
        %v1513 = vpack.c.b16 %v1169, %v1161
        %v1514 = vpack.c.b16 %v1170, %v1162
        %v1515 = vpack.c.b16 %v1171, %v1163
        %v1516 = vpack.c.b16 %v1180, %v1172
        %v1517 = vpack.c.b16 %v1181, %v1173
        %v1518 = vpack.c.b16 %v1182, %v1174
        %v1519 = vpack.c.b16 %v1183, %v1175
        %v1520 = vpack.c.b16 %v1184, %v1176
        %v1521 = vpack.c.b16 %v1185, %v1177
        %v1522 = vpack.c.b16 %v1186, %v1178
        %v1523 = vpack.c.b16 %v1187, %v1179
        %v1524 = vpack.c.b16 %v1196, %v1188
        %v1525 = vpack.c.b16 %v1197, %v1189
        %v1526 = vpack.c.b16 %v1198, %v1190
        %v1527 = vpack.c.b16 %v1199, %v1191
        %v1528 = vpack.c.b16 %v1200, %v1192
        %v1529 = vpack.c.b16 %v1201, %v1193
        %v1530 = vpack.c.b16 %v1202, %v1194
        %v1531 = vpack.c.b16 %v1203, %v1195
        %v1532 = vpack.c.b16 %v1212, %v1204
        %v1533 = vpack.c.b16 %v1213, %v1205
        %v1534 = vpack.c.b16 %v1214, %v1206
        %v1535 = vpack.c.b16 %v1215, %v1207
        %v1536 = vpack.c.b16 %v1216, %v1208
        %v1537 = vpack.c.b16 %v1217, %v1209
        %v1538 = vpack.c.b16 %v1218, %v1210
        %v1539 = vpack.c.b16 %v1219, %v1211
        %v1540 = vpack.c.b16 %v1228, %v1220
        %v1541 = vpack.c.b16 %v1229, %v1221
        %v1542 = vpack.c.b16 %v1230, %v1222
        %v1543 = vpack.c.b16 %v1231, %v1223
        %v1544 = vpack.c.b16 %v1232, %v1224
        %v1545 = vpack.c.b16 %v1233, %v1225
        %v1546 = vpack.c.b16 %v1234, %v1226
        %v1547 = vpack.c.b16 %v1235, %v1227
        %v1548 = vpack.c.b16 %v1244, %v1236
        %v1549 = vpack.c.b16 %v1245, %v1237
        %v1550 = vpack.c.b16 %v1246, %v1238
        %v1551 = vpack.c.b16 %v1247, %v1239
        %v1552 = vpack.c.b16 %v1248, %v1240
        %v1553 = vpack.c.b16 %v1249, %v1241
        %v1554 = vpack.c.b16 %v1250, %v1242
        %v1555 = vpack.c.b16 %v1251, %v1243
        %v1556 = vpack.c.b16 %v1260, %v1252
        %v1557 = vpack.c.b16 %v1261, %v1253
        %v1558 = vpack.c.b16 %v1262, %v1254
        %v1559 = vpack.c.b16 %v1263, %v1255
        %v1560 = vpack.c.b16 %v1264, %v1256
        %v1561 = vpack.c.b16 %v1265, %v1257
        %v1562 = vpack.c.b16 %v1266, %v1258
        %v1563 = vpack.c.b16 %v1267, %v1259
        %v1564 = vpack.c.b16 %v1276, %v1268
        %v1565 = vpack.c.b16 %v1277, %v1269
        %v1566 = vpack.c.b16 %v1278, %v1270
        %v1567 = vpack.c.b16 %v1279, %v1271
        %v1568 = vpack.c.b16 %v1280, %v1272
        %v1569 = vpack.c.b16 %v1281, %v1273
        %v1570 = vpack.c.b16 %v1282, %v1274
        %v1571 = vpack.c.b16 %v1283, %v1275
        %v1572 = vpack.c.b16 %v1292, %v1284
        %v1573 = vpack.c.b16 %v1293, %v1285
        %v1574 = vpack.c.b16 %v1294, %v1286
        %v1575 = vpack.c.b16 %v1295, %v1287
        %v1576 = vpack.c.b16 %v1296, %v1288
        %v1577 = vpack.c.b16 %v1297, %v1289
        %v1578 = vpack.c.b16 %v1298, %v1290
        %v1579 = vpack.c.b16 %v1299, %v1291
        %v1580 = vpack.c.b16 %v1308, %v1300
        %v1581 = vpack.c.b16 %v1309, %v1301
        %v1582 = vpack.c.b16 %v1310, %v1302
        %v1583 = vpack.c.b16 %v1311, %v1303
        %v1584 = vpack.c.b16 %v1312, %v1304
        %v1585 = vpack.c.b16 %v1313, %v1305
        %v1586 = vpack.c.b16 %v1314, %v1306
        %v1587 = vpack.c.b16 %v1315, %v1307
        %v1588 = vpack.c.b16 %v1324, %v1316
        %v1589 = vpack.c.b16 %v1325, %v1317
        %v1590 = vpack.c.b16 %v1326, %v1318
        %v1591 = vpack.c.b16 %v1327, %v1319
        %v1592 = vpack.c.b16 %v1328, %v1320
        %v1593 = vpack.c.b16 %v1329, %v1321
        %v1594 = vpack.c.b16 %v1330, %v1322
        %v1595 = vpack.c.b16 %v1331, %v1323
        %v1596 = vpack.c.b16 %v1340, %v1332
        %v1597 = vpack.c.b16 %v1341, %v1333
        %v1598 = vpack.c.b16 %v1342, %v1334
        %v1599 = vpack.c.b16 %v1343, %v1335
        %v1600 = vpack.c.b16 %v1344, %v1336
        %v1601 = vpack.c.b16 %v1345, %v1337
        %v1602 = vpack.c.b16 %v1346, %v1338
        %v1603 = vpack.c.b16 %v1347, %v1339
        %1860 = vmatprep.subr.bf16.mxu0 %v1405
        %1861 = vmatpush1.bf16.msra.mxu0 %v1404
        %1862 = vmatprep.subr.bf16.mxu0 %v1397
        %1863 = vmatpush1.bf16.msra.mxu0 %v1396
        %1864 = vmatprep.subr.bf16.mxu0 %v1389
        %1865 = vmatpush1.bf16.msra.mxu0 %v1388
        %1866 = vmatprep.subr.bf16.mxu0 %v1381
        %1867 = vmatpush1.bf16.msra.mxu0 %v1380
        %1868 = vmatprep.subr.bf16.mxu0 %v1373
        %1869 = vmatpush1.bf16.msra.mxu0 %v1372
        %1870 = vmatprep.subr.bf16.mxu0 %v1365
        %1871 = vmatpush1.bf16.msra.mxu0 %v1364
        %1872 = vmatprep.subr.bf16.mxu0 %v1357
        %1873 = vmatpush1.bf16.msra.mxu0 %v1356
        %1874 = vmatprep.subr.bf16.mxu0 %v1349
        %1875 = vmatpush1.bf16.msra.mxu0 %v1348
        %1876 = vmatprep.subr.bf16.mxu0 %v1469
        %1877 = vmatpush2.bf16.msra.mxu0 %v1468
        %1878 = vmatprep.subr.bf16.mxu0 %v1461
        %1879 = vmatpush2.bf16.msra.mxu0 %v1460
        %1880 = vmatprep.subr.bf16.mxu0 %v1453
        %1881 = vmatpush2.bf16.msra.mxu0 %v1452
        %1882 = vmatprep.subr.bf16.mxu0 %v1445
        %1883 = vmatpush2.bf16.msra.mxu0 %v1444
        %1884 = vmatprep.subr.bf16.mxu0 %v1437
        %1885 = vmatpush2.bf16.msra.mxu0 %v1436
        %1886 = vmatprep.subr.bf16.mxu0 %v1429
        %1887 = vmatpush2.bf16.msra.mxu0 %v1428
        %1888 = vmatprep.subr.bf16.mxu0 %v1421
        %1889 = vmatpush2.bf16.msra.mxu0 %v1420
        %1890 = vmatprep.subr.bf16.mxu0 %v1413
        %1891 = vmatpush2.bf16.msra.mxu0 %v1412
        %1892 = vmatprep.mubr.bf16.mxu0 %v573
        %1893 = vmatmul.mubr.bf16.gmra.mxu0 %v572
        %v1894 = vpop.f32.mrf.mxu0
        %v1895 = vadd.f32 0.0, %v1894
        %v1896 = vpop.f32.mrf.mxu0
        %v1897 = vadd.f32 0.0, %v1896
        %v1898 = vpop.f32.mrf.mxu0
        %v1899 = vpop.f32.mrf.mxu0
        %1900 = vdwg.mxu0
        %1901 = vmatprep.subr.bf16.mxu0 %v1533
        %1902 = vmatpush1.bf16.msra.mxu0 %v1532
        %1903 = vmatprep.subr.bf16.mxu0 %v1525
        %1904 = vmatpush1.bf16.msra.mxu0 %v1524
        %1905 = vmatprep.subr.bf16.mxu0 %v1517
        %1906 = vmatpush1.bf16.msra.mxu0 %v1516
        %1907 = vmatprep.subr.bf16.mxu0 %v1509
        %1908 = vmatpush1.bf16.msra.mxu0 %v1508
        %1909 = vmatprep.subr.bf16.mxu0 %v1501
        %1910 = vmatpush1.bf16.msra.mxu0 %v1500
        %1911 = vmatprep.subr.bf16.mxu0 %v1493
        %1912 = vmatpush1.bf16.msra.mxu0 %v1492
        %1913 = vmatprep.subr.bf16.mxu0 %v1485
        %1914 = vmatpush1.bf16.msra.mxu0 %v1484
        %1915 = vmatprep.subr.bf16.mxu0 %v1477
        %1916 = vmatpush1.bf16.msra.mxu0 %v1476
        %1917 = vmatprep.subr.bf16.mxu0 %v1597
        %1918 = vmatpush2.bf16.msra.mxu0 %v1596
        %1919 = vmatprep.subr.bf16.mxu0 %v1589
        %1920 = vmatpush2.bf16.msra.mxu0 %v1588
        %1921 = vmatprep.subr.bf16.mxu0 %v1581
        %1922 = vmatpush2.bf16.msra.mxu0 %v1580
        %1923 = vmatprep.subr.bf16.mxu0 %v1573
        %1924 = vmatpush2.bf16.msra.mxu0 %v1572
        %1925 = vmatprep.subr.bf16.mxu0 %v1565
        %1926 = vmatpush2.bf16.msra.mxu0 %v1564
        %1927 = vmatprep.subr.bf16.mxu0 %v1557
        %1928 = vmatpush2.bf16.msra.mxu0 %v1556
        %1929 = vmatprep.subr.bf16.mxu0 %v1549
        %1930 = vmatpush2.bf16.msra.mxu0 %v1548
        %1931 = vmatprep.subr.bf16.mxu0 %v1541
        %1932 = vmatpush2.bf16.msra.mxu0 %v1540
        %1933 = vmatprep.mubr.bf16.mxu0 %v575
        %1934 = vmatmul.mubr.bf16.gmra.mxu0 %v574
        %v1935 = vpop.f32.mrf.mxu0
        %v1936 = vadd.f32 %v1895, %v1935
        %v1937 = vpop.f32.mrf.mxu0
        %v1938 = vadd.f32 %v1897, %v1937
        %v1939 = vpop.f32.mrf.mxu0
        %v1940 = vpop.f32.mrf.mxu0
        %1941 = vdwg.mxu0
        %1942 = vmatprep.subr.bf16.mxu0 %v1407
        %1943 = vmatpush1.bf16.msra.mxu0 %v1406
        %1944 = vmatprep.subr.bf16.mxu0 %v1399
        %1945 = vmatpush1.bf16.msra.mxu0 %v1398
        %1946 = vmatprep.subr.bf16.mxu0 %v1391
        %1947 = vmatpush1.bf16.msra.mxu0 %v1390
        %1948 = vmatprep.subr.bf16.mxu0 %v1383
        %1949 = vmatpush1.bf16.msra.mxu0 %v1382
        %1950 = vmatprep.subr.bf16.mxu0 %v1375
        %1951 = vmatpush1.bf16.msra.mxu0 %v1374
        %1952 = vmatprep.subr.bf16.mxu0 %v1367
        %1953 = vmatpush1.bf16.msra.mxu0 %v1366
        %1954 = vmatprep.subr.bf16.mxu0 %v1359
        %1955 = vmatpush1.bf16.msra.mxu0 %v1358
        %1956 = vmatprep.subr.bf16.mxu0 %v1351
        %1957 = vmatpush1.bf16.msra.mxu0 %v1350
        %1958 = vmatprep.subr.bf16.mxu0 %v1471
        %1959 = vmatpush2.bf16.msra.mxu0 %v1470
        %1960 = vmatprep.subr.bf16.mxu0 %v1463
        %1961 = vmatpush2.bf16.msra.mxu0 %v1462
        %1962 = vmatprep.subr.bf16.mxu0 %v1455
        %1963 = vmatpush2.bf16.msra.mxu0 %v1454
        %1964 = vmatprep.subr.bf16.mxu0 %v1447
        %1965 = vmatpush2.bf16.msra.mxu0 %v1446
        %1966 = vmatprep.subr.bf16.mxu0 %v1439
        %1967 = vmatpush2.bf16.msra.mxu0 %v1438
        %1968 = vmatprep.subr.bf16.mxu0 %v1431
        %1969 = vmatpush2.bf16.msra.mxu0 %v1430
        %1970 = vmatprep.subr.bf16.mxu0 %v1423
        %1971 = vmatpush2.bf16.msra.mxu0 %v1422
        %1972 = vmatprep.subr.bf16.mxu0 %v1415
        %1973 = vmatpush2.bf16.msra.mxu0 %v1414
        %1974 = vmatprep.mubr.bf16.mxu0 %v573
        %1975 = vmatmul.mubr.bf16.gmra.mxu0 %v572
        %v1976 = vpop.f32.mrf.mxu0
        %v1977 = vadd.f32 0.0, %v1976
        %v1978 = vpop.f32.mrf.mxu0
        %v1979 = vadd.f32 0.0, %v1978
        %v1980 = vpop.f32.mrf.mxu0
        %v1981 = vpop.f32.mrf.mxu0
        %1982 = vdwg.mxu0
        %1983 = vmatprep.subr.bf16.mxu0 %v1535
        %1984 = vmatpush1.bf16.msra.mxu0 %v1534
        %1985 = vmatprep.subr.bf16.mxu0 %v1527
        %1986 = vmatpush1.bf16.msra.mxu0 %v1526
        %1987 = vmatprep.subr.bf16.mxu0 %v1519
        %1988 = vmatpush1.bf16.msra.mxu0 %v1518
        %1989 = vmatprep.subr.bf16.mxu0 %v1511
        %1990 = vmatpush1.bf16.msra.mxu0 %v1510
        %1991 = vmatprep.subr.bf16.mxu0 %v1503
        %1992 = vmatpush1.bf16.msra.mxu0 %v1502
        %1993 = vmatprep.subr.bf16.mxu0 %v1495
        %1994 = vmatpush1.bf16.msra.mxu0 %v1494
        %1995 = vmatprep.subr.bf16.mxu0 %v1487
        %1996 = vmatpush1.bf16.msra.mxu0 %v1486
        %1997 = vmatprep.subr.bf16.mxu0 %v1479
        %1998 = vmatpush1.bf16.msra.mxu0 %v1478
        %1999 = vmatprep.subr.bf16.mxu0 %v1599
        %2000 = vmatpush2.bf16.msra.mxu0 %v1598
        %2001 = vmatprep.subr.bf16.mxu0 %v1591
        %2002 = vmatpush2.bf16.msra.mxu0 %v1590
        %2003 = vmatprep.subr.bf16.mxu0 %v1583
        %2004 = vmatpush2.bf16.msra.mxu0 %v1582
        %2005 = vmatprep.subr.bf16.mxu0 %v1575
        %2006 = vmatpush2.bf16.msra.mxu0 %v1574
        %2007 = vmatprep.subr.bf16.mxu0 %v1567
        %2008 = vmatpush2.bf16.msra.mxu0 %v1566
        %2009 = vmatprep.subr.bf16.mxu0 %v1559
        %2010 = vmatpush2.bf16.msra.mxu0 %v1558
        %2011 = vmatprep.subr.bf16.mxu0 %v1551
        %2012 = vmatpush2.bf16.msra.mxu0 %v1550
        %2013 = vmatprep.subr.bf16.mxu0 %v1543
        %2014 = vmatpush2.bf16.msra.mxu0 %v1542
        %2015 = vmatprep.mubr.bf16.mxu0 %v575
        %2016 = vmatmul.mubr.bf16.gmra.mxu0 %v574
        %v2017 = vpop.f32.mrf.mxu0
        %v2018 = vadd.f32 %v1977, %v2017
        %v2019 = vpop.f32.mrf.mxu0
        %v2020 = vadd.f32 %v1979, %v2019
        %v2021 = vpop.f32.mrf.mxu0
        %v2022 = vpop.f32.mrf.mxu0
        %2023 = vdwg.mxu0
        %2024 = vmatprep.subr.bf16.mxu0 %v1409
        %2025 = vmatpush1.bf16.msra.mxu0 %v1408
        %2026 = vmatprep.subr.bf16.mxu0 %v1401
        %2027 = vmatpush1.bf16.msra.mxu0 %v1400
        %2028 = vmatprep.subr.bf16.mxu0 %v1393
        %2029 = vmatpush1.bf16.msra.mxu0 %v1392
        %2030 = vmatprep.subr.bf16.mxu0 %v1385
        %2031 = vmatpush1.bf16.msra.mxu0 %v1384
        %2032 = vmatprep.subr.bf16.mxu0 %v1377
        %2033 = vmatpush1.bf16.msra.mxu0 %v1376
        %2034 = vmatprep.subr.bf16.mxu0 %v1369
        %2035 = vmatpush1.bf16.msra.mxu0 %v1368
        %2036 = vmatprep.subr.bf16.mxu0 %v1361
        %2037 = vmatpush1.bf16.msra.mxu0 %v1360
        %2038 = vmatprep.subr.bf16.mxu0 %v1353
        %2039 = vmatpush1.bf16.msra.mxu0 %v1352
        %2040 = vmatprep.subr.bf16.mxu0 %v1473
        %2041 = vmatpush2.bf16.msra.mxu0 %v1472
        %2042 = vmatprep.subr.bf16.mxu0 %v1465
        %2043 = vmatpush2.bf16.msra.mxu0 %v1464
        %2044 = vmatprep.subr.bf16.mxu0 %v1457
        %2045 = vmatpush2.bf16.msra.mxu0 %v1456
        %2046 = vmatprep.subr.bf16.mxu0 %v1449
        %2047 = vmatpush2.bf16.msra.mxu0 %v1448
        %2048 = vmatprep.subr.bf16.mxu0 %v1441
        %2049 = vmatpush2.bf16.msra.mxu0 %v1440
        %2050 = vmatprep.subr.bf16.mxu0 %v1433
        %2051 = vmatpush2.bf16.msra.mxu0 %v1432
        %2052 = vmatprep.subr.bf16.mxu0 %v1425
        %2053 = vmatpush2.bf16.msra.mxu0 %v1424
        %2054 = vmatprep.subr.bf16.mxu0 %v1417
        %2055 = vmatpush2.bf16.msra.mxu0 %v1416
        %2056 = vmatprep.mubr.bf16.mxu0 %v573
        %2057 = vmatmul.mubr.bf16.gmra.mxu0 %v572
        %v2058 = vpop.f32.mrf.mxu0
        %v2059 = vadd.f32 0.0, %v2058
        %v2060 = vpop.f32.mrf.mxu0
        %v2061 = vadd.f32 0.0, %v2060
        %v2062 = vpop.f32.mrf.mxu0
        %v2063 = vpop.f32.mrf.mxu0
        %2064 = vdwg.mxu0
        %2065 = vmatprep.subr.bf16.mxu0 %v1537
        %2066 = vmatpush1.bf16.msra.mxu0 %v1536
        %2067 = vmatprep.subr.bf16.mxu0 %v1529
        %2068 = vmatpush1.bf16.msra.mxu0 %v1528
        %2069 = vmatprep.subr.bf16.mxu0 %v1521
        %2070 = vmatpush1.bf16.msra.mxu0 %v1520
        %2071 = vmatprep.subr.bf16.mxu0 %v1513
        %2072 = vmatpush1.bf16.msra.mxu0 %v1512
        %2073 = vmatprep.subr.bf16.mxu0 %v1505
        %2074 = vmatpush1.bf16.msra.mxu0 %v1504
        %2075 = vmatprep.subr.bf16.mxu0 %v1497
        %2076 = vmatpush1.bf16.msra.mxu0 %v1496
        %2077 = vmatprep.subr.bf16.mxu0 %v1489
        %2078 = vmatpush1.bf16.msra.mxu0 %v1488
        %2079 = vmatprep.subr.bf16.mxu0 %v1481
        %2080 = vmatpush1.bf16.msra.mxu0 %v1480
        %2081 = vmatprep.subr.bf16.mxu0 %v1601
        %2082 = vmatpush2.bf16.msra.mxu0 %v1600
        %2083 = vmatprep.subr.bf16.mxu0 %v1593
        %2084 = vmatpush2.bf16.msra.mxu0 %v1592
        %2085 = vmatprep.subr.bf16.mxu0 %v1585
        %2086 = vmatpush2.bf16.msra.mxu0 %v1584
        %2087 = vmatprep.subr.bf16.mxu0 %v1577
        %2088 = vmatpush2.bf16.msra.mxu0 %v1576
        %2089 = vmatprep.subr.bf16.mxu0 %v1569
        %2090 = vmatpush2.bf16.msra.mxu0 %v1568
        %2091 = vmatprep.subr.bf16.mxu0 %v1561
        %2092 = vmatpush2.bf16.msra.mxu0 %v1560
        %2093 = vmatprep.subr.bf16.mxu0 %v1553
        %2094 = vmatpush2.bf16.msra.mxu0 %v1552
        %2095 = vmatprep.subr.bf16.mxu0 %v1545
        %2096 = vmatpush2.bf16.msra.mxu0 %v1544
        %2097 = vmatprep.mubr.bf16.mxu0 %v575
        %2098 = vmatmul.mubr.bf16.gmra.mxu0 %v574
        %v2099 = vpop.f32.mrf.mxu0
        %v2100 = vadd.f32 %v2059, %v2099
        %v2101 = vpop.f32.mrf.mxu0
        %v2102 = vadd.f32 %v2061, %v2101
        %v2103 = vpop.f32.mrf.mxu0
        %v2104 = vpop.f32.mrf.mxu0
        %2105 = vdwg.mxu0
        %2106 = vmatprep.subr.bf16.mxu0 %v1411
        %2107 = vmatpush1.bf16.msra.mxu0 %v1410
        %2108 = vmatprep.subr.bf16.mxu0 %v1403
        %2109 = vmatpush1.bf16.msra.mxu0 %v1402
        %2110 = vmatprep.subr.bf16.mxu0 %v1395
        %2111 = vmatpush1.bf16.msra.mxu0 %v1394
        %2112 = vmatprep.subr.bf16.mxu0 %v1387
        %2113 = vmatpush1.bf16.msra.mxu0 %v1386
        %2114 = vmatprep.subr.bf16.mxu0 %v1379
        %2115 = vmatpush1.bf16.msra.mxu0 %v1378
        %2116 = vmatprep.subr.bf16.mxu0 %v1371
        %2117 = vmatpush1.bf16.msra.mxu0 %v1370
        %2118 = vmatprep.subr.bf16.mxu0 %v1363
        %2119 = vmatpush1.bf16.msra.mxu0 %v1362
        %2120 = vmatprep.subr.bf16.mxu0 %v1355
        %2121 = vmatpush1.bf16.msra.mxu0 %v1354
        %2122 = vmatprep.subr.bf16.mxu0 %v1475
        %2123 = vmatpush2.bf16.msra.mxu0 %v1474
        %2124 = vmatprep.subr.bf16.mxu0 %v1467
        %2125 = vmatpush2.bf16.msra.mxu0 %v1466
        %2126 = vmatprep.subr.bf16.mxu0 %v1459
        %2127 = vmatpush2.bf16.msra.mxu0 %v1458
        %2128 = vmatprep.subr.bf16.mxu0 %v1451
        %2129 = vmatpush2.bf16.msra.mxu0 %v1450
        %2130 = vmatprep.subr.bf16.mxu0 %v1443
        %2131 = vmatpush2.bf16.msra.mxu0 %v1442
        %2132 = vmatprep.subr.bf16.mxu0 %v1435
        %2133 = vmatpush2.bf16.msra.mxu0 %v1434
        %2134 = vmatprep.subr.bf16.mxu0 %v1427
        %2135 = vmatpush2.bf16.msra.mxu0 %v1426
        %2136 = vmatprep.subr.bf16.mxu0 %v1419
        %2137 = vmatpush2.bf16.msra.mxu0 %v1418
        %2138 = vmatprep.mubr.bf16.mxu0 %v573
        %2139 = vmatmul.mubr.bf16.gmra.mxu0 %v572
        %v2140 = vpop.f32.mrf.mxu0
        %v2141 = vadd.f32 0.0, %v2140
        %v2142 = vpop.f32.mrf.mxu0
        %v2143 = vadd.f32 0.0, %v2142
        %v2144 = vpop.f32.mrf.mxu0
        %v2145 = vpop.f32.mrf.mxu0
        %2146 = vdwg.mxu0
        %2147 = vmatprep.subr.bf16.mxu0 %v1539
        %2148 = vmatpush1.bf16.msra.mxu0 %v1538
        %2149 = vmatprep.subr.bf16.mxu0 %v1531
        %2150 = vmatpush1.bf16.msra.mxu0 %v1530
        %2151 = vmatprep.subr.bf16.mxu0 %v1523
        %2152 = vmatpush1.bf16.msra.mxu0 %v1522
        %2153 = vmatprep.subr.bf16.mxu0 %v1515
        %2154 = vmatpush1.bf16.msra.mxu0 %v1514
        %2155 = vmatprep.subr.bf16.mxu0 %v1507
        %2156 = vmatpush1.bf16.msra.mxu0 %v1506
        %2157 = vmatprep.subr.bf16.mxu0 %v1499
        %2158 = vmatpush1.bf16.msra.mxu0 %v1498
        %2159 = vmatprep.subr.bf16.mxu0 %v1491
        %2160 = vmatpush1.bf16.msra.mxu0 %v1490
        %2161 = vmatprep.subr.bf16.mxu0 %v1483
        %2162 = vmatpush1.bf16.msra.mxu0 %v1482
        %2163 = vmatprep.subr.bf16.mxu0 %v1603
        %2164 = vmatpush2.bf16.msra.mxu0 %v1602
        %2165 = vmatprep.subr.bf16.mxu0 %v1595
        %2166 = vmatpush2.bf16.msra.mxu0 %v1594
        %2167 = vmatprep.subr.bf16.mxu0 %v1587
        %2168 = vmatpush2.bf16.msra.mxu0 %v1586
        %2169 = vmatprep.subr.bf16.mxu0 %v1579
        %2170 = vmatpush2.bf16.msra.mxu0 %v1578
        %2171 = vmatprep.subr.bf16.mxu0 %v1571
        %2172 = vmatpush2.bf16.msra.mxu0 %v1570
        %2173 = vmatprep.subr.bf16.mxu0 %v1563
        %2174 = vmatpush2.bf16.msra.mxu0 %v1562
        %2175 = vmatprep.subr.bf16.mxu0 %v1555
        %2176 = vmatpush2.bf16.msra.mxu0 %v1554
        %2177 = vmatprep.subr.bf16.mxu0 %v1547
        %2178 = vmatpush2.bf16.msra.mxu0 %v1546
        %2179 = vmatprep.mubr.bf16.mxu0 %v575
        %2180 = vmatmul.mubr.bf16.gmra.mxu0 %v574
        %v2181 = vpop.f32.mrf.mxu0
        %v2182 = vadd.f32 %v2141, %v2181
        %v2183 = vpop.f32.mrf.mxu0
        %v2184 = vadd.f32 %v2143, %v2183
        %v2185 = vpop.f32.mrf.mxu0
        %v2186 = vpop.f32.mrf.mxu0
        %2187 = vdwg.mxu0
        %v2188 = vadd.f32 %v300, %v1936
        %v2189 = vadd.f32 %v301, %v1938
        %v2190 = vadd.f32 %v302, %v2018
        %v2191 = vadd.f32 %v303, %v2020
        %v2192 = vadd.f32 %v304, %v2100
        %v2193 = vadd.f32 %v305, %v2102
        %v2194 = vadd.f32 %v306, %v2182
        %v2195 = vadd.f32 %v307, %v2184
        %2196 = vst [vmem:[#allocation2] sm:$0xff] %v2188
        %2197 = vst [vmem:[#allocation2 + $0x8] sm:$0xff] %v2189
        %2198 = vst [vmem:[#allocation2 + $0x10] sm:$0xff] %v2190
        %2199 = vst [vmem:[#allocation2 + $0x18] sm:$0xff] %v2191
        %2200 = vst [vmem:[#allocation2 + $0x20] sm:$0xff] %v2192
        %2201 = vst [vmem:[#allocation2 + $0x28] sm:$0xff] %v2193
        %2202 = vst [vmem:[#allocation2 + $0x30] sm:$0xff] %v2194
        %2203 = vst [vmem:[#allocation2 + $0x38] sm:$0xff] %v2195
        %p2204 = scmp.eq.s32.totalorder %s26, 3
        // Predicated region
        $region53: #{tpu_custom_call.1} parent=35 // pred_check
          %p2205 = pneg %p2204
        $region54: #{tpu_custom_call.1} parent=35 // pred_check_branch
          %2207 = sbr.rel (%p2205) target = $region56
        $region55: #{tpu_custom_call.1} parent=35 // pred_region
          %v2208 = vld [vmem:[#allocation2] sm:$0xff]
          %v2209 = vld [vmem:[#allocation2 + $0x8] sm:$0xff]
          %v2210 = vld [vmem:[#allocation2 + $0x10] sm:$0xff]
          %v2211 = vld [vmem:[#allocation2 + $0x18] sm:$0xff]
          %v2212 = vld [vmem:[#allocation2 + $0x20] sm:$0xff]
          %v2213 = vld [vmem:[#allocation2 + $0x28] sm:$0xff]
          %v2214 = vld [vmem:[#allocation2 + $0x30] sm:$0xff]
          %v2215 = vld [vmem:[#allocation2 + $0x38] sm:$0xff]
          %v2216 = vmax.f32 %v2208, 0.0
          %v2217 = vmax.f32 %v2209, 0.0
          %v2218 = vmax.f32 %v2210, 0.0
          %v2219 = vmax.f32 %v2211, 0.0
          %v2220 = vmax.f32 %v2212, 0.0
          %v2221 = vmax.f32 %v2213, 0.0
          %v2222 = vmax.f32 %v2214, 0.0
          %v2223 = vmax.f32 %v2215, 0.0
          %v2224 = vpack.c.bf16 %v2216, %v2216
          %v2225 = vpack.c.bf16 %v2217, %v2217
          %v2226 = vpack.c.bf16 %v2218, %v2218
          %v2227 = vpack.c.bf16 %v2219, %v2219
          %v2228 = vpack.c.bf16 %v2220, %v2220
          %v2229 = vpack.c.bf16 %v2221, %v2221
          %v2230 = vpack.c.bf16 %v2222, %v2222
          %v2231 = vpack.c.bf16 %v2223, %v2223
          %v2232 = vld [vmem:[#allocation7] sm:$0xff]
          %v2233 = vld [vmem:[#allocation7 + $0x8] sm:$0xff]
          %v2234 = vld [vmem:[#allocation7 + $0x10] sm:$0xff]
          %v2235 = vld [vmem:[#allocation7 + $0x18] sm:$0xff]
          %v2236 = vld [vmem:[#allocation7 + $0x20] sm:$0xff]
          %v2237 = vld [vmem:[#allocation7 + $0x28] sm:$0xff]
          %v2238 = vld [vmem:[#allocation7 + $0x30] sm:$0xff]
          %v2239 = vld [vmem:[#allocation7 + $0x38] sm:$0xff]
          %v2240 = vld [vmem:[#allocation7 + $0x40] sm:$0xff]
          %v2241 = vld [vmem:[#allocation7 + $0x48] sm:$0xff]
          %v2242 = vld [vmem:[#allocation7 + $0x50] sm:$0xff]
          %v2243 = vld [vmem:[#allocation7 + $0x58] sm:$0xff]
          %v2244 = vld [vmem:[#allocation7 + $0x60] sm:$0xff]
          %v2245 = vld [vmem:[#allocation7 + $0x68] sm:$0xff]
          %v2246 = vld [vmem:[#allocation7 + $0x70] sm:$0xff]
          %v2247 = vld [vmem:[#allocation7 + $0x78] sm:$0xff]
          %v2248 = vld [vmem:[#allocation7 + $0x80] sm:$0xff]
          %v2249 = vld [vmem:[#allocation7 + $0x88] sm:$0xff]
          %v2250 = vld [vmem:[#allocation7 + $0x90] sm:$0xff]
          %v2251 = vld [vmem:[#allocation7 + $0x98] sm:$0xff]
          %v2252 = vld [vmem:[#allocation7 + $0xa0] sm:$0xff]
          %v2253 = vld [vmem:[#allocation7 + $0xa8] sm:$0xff]
          %v2254 = vld [vmem:[#allocation7 + $0xb0] sm:$0xff]
          %v2255 = vld [vmem:[#allocation7 + $0xb8] sm:$0xff]
          %v2256 = vld [vmem:[#allocation7 + $0xc0] sm:$0xff]
          %v2257 = vld [vmem:[#allocation7 + $0xc8] sm:$0xff]
          %v2258 = vld [vmem:[#allocation7 + $0xd0] sm:$0xff]
          %v2259 = vld [vmem:[#allocation7 + $0xd8] sm:$0xff]
          %v2260 = vld [vmem:[#allocation7 + $0xe0] sm:$0xff]
          %v2261 = vld [vmem:[#allocation7 + $0xe8] sm:$0xff]
          %v2262 = vld [vmem:[#allocation7 + $0xf0] sm:$0xff]
          %v2263 = vld [vmem:[#allocation7 + $0xf8] sm:$0xff]
          %v2264 = vld [vmem:[#allocation7 + $0x100] sm:$0xff]
          %v2265 = vld [vmem:[#allocation7 + $0x108] sm:$0xff]
          %v2266 = vld [vmem:[#allocation7 + $0x110] sm:$0xff]
          %v2267 = vld [vmem:[#allocation7 + $0x118] sm:$0xff]
          %v2268 = vld [vmem:[#allocation7 + $0x120] sm:$0xff]
          %v2269 = vld [vmem:[#allocation7 + $0x128] sm:$0xff]
          %v2270 = vld [vmem:[#allocation7 + $0x130] sm:$0xff]
          %v2271 = vld [vmem:[#allocation7 + $0x138] sm:$0xff]
          %v2272 = vld [vmem:[#allocation7 + $0x140] sm:$0xff]
          %v2273 = vld [vmem:[#allocation7 + $0x148] sm:$0xff]
          %v2274 = vld [vmem:[#allocation7 + $0x150] sm:$0xff]
          %v2275 = vld [vmem:[#allocation7 + $0x158] sm:$0xff]
          %v2276 = vld [vmem:[#allocation7 + $0x160] sm:$0xff]
          %v2277 = vld [vmem:[#allocation7 + $0x168] sm:$0xff]
          %v2278 = vld [vmem:[#allocation7 + $0x170] sm:$0xff]
          %v2279 = vld [vmem:[#allocation7 + $0x178] sm:$0xff]
          %v2280 = vld [vmem:[#allocation7 + $0x180] sm:$0xff]
          %v2281 = vld [vmem:[#allocation7 + $0x188] sm:$0xff]
          %v2282 = vld [vmem:[#allocation7 + $0x190] sm:$0xff]
          %v2283 = vld [vmem:[#allocation7 + $0x198] sm:$0xff]
          %v2284 = vld [vmem:[#allocation7 + $0x1a0] sm:$0xff]
          %v2285 = vld [vmem:[#allocation7 + $0x1a8] sm:$0xff]
          %v2286 = vld [vmem:[#allocation7 + $0x1b0] sm:$0xff]
          %v2287 = vld [vmem:[#allocation7 + $0x1b8] sm:$0xff]
          %v2288 = vld [vmem:[#allocation7 + $0x1c0] sm:$0xff]
          %v2289 = vld [vmem:[#allocation7 + $0x1c8] sm:$0xff]
          %v2290 = vld [vmem:[#allocation7 + $0x1d0] sm:$0xff]
          %v2291 = vld [vmem:[#allocation7 + $0x1d8] sm:$0xff]
          %v2292 = vld [vmem:[#allocation7 + $0x1e0] sm:$0xff]
          %v2293 = vld [vmem:[#allocation7 + $0x1e8] sm:$0xff]
          %v2294 = vld [vmem:[#allocation7 + $0x1f0] sm:$0xff]
          %v2295 = vld [vmem:[#allocation7 + $0x1f8] sm:$0xff]
          %v2296 = vld [vmem:[#allocation7 + $0x200] sm:$0xff]
          %v2297 = vld [vmem:[#allocation7 + $0x208] sm:$0xff]
          %v2298 = vld [vmem:[#allocation7 + $0x210] sm:$0xff]
          %v2299 = vld [vmem:[#allocation7 + $0x218] sm:$0xff]
          %v2300 = vld [vmem:[#allocation7 + $0x220] sm:$0xff]
          %v2301 = vld [vmem:[#allocation7 + $0x228] sm:$0xff]
          %v2302 = vld [vmem:[#allocation7 + $0x230] sm:$0xff]
          %v2303 = vld [vmem:[#allocation7 + $0x238] sm:$0xff]
          %v2304 = vld [vmem:[#allocation7 + $0x240] sm:$0xff]
          %v2305 = vld [vmem:[#allocation7 + $0x248] sm:$0xff]
          %v2306 = vld [vmem:[#allocation7 + $0x250] sm:$0xff]
          %v2307 = vld [vmem:[#allocation7 + $0x258] sm:$0xff]
          %v2308 = vld [vmem:[#allocation7 + $0x260] sm:$0xff]
          %v2309 = vld [vmem:[#allocation7 + $0x268] sm:$0xff]
          %v2310 = vld [vmem:[#allocation7 + $0x270] sm:$0xff]
          %v2311 = vld [vmem:[#allocation7 + $0x278] sm:$0xff]
          %v2312 = vld [vmem:[#allocation7 + $0x280] sm:$0xff]
          %v2313 = vld [vmem:[#allocation7 + $0x288] sm:$0xff]
          %v2314 = vld [vmem:[#allocation7 + $0x290] sm:$0xff]
          %v2315 = vld [vmem:[#allocation7 + $0x298] sm:$0xff]
          %v2316 = vld [vmem:[#allocation7 + $0x2a0] sm:$0xff]
          %v2317 = vld [vmem:[#allocation7 + $0x2a8] sm:$0xff]
          %v2318 = vld [vmem:[#allocation7 + $0x2b0] sm:$0xff]
          %v2319 = vld [vmem:[#allocation7 + $0x2b8] sm:$0xff]
          %v2320 = vld [vmem:[#allocation7 + $0x2c0] sm:$0xff]
          %v2321 = vld [vmem:[#allocation7 + $0x2c8] sm:$0xff]
          %v2322 = vld [vmem:[#allocation7 + $0x2d0] sm:$0xff]
          %v2323 = vld [vmem:[#allocation7 + $0x2d8] sm:$0xff]
          %v2324 = vld [vmem:[#allocation7 + $0x2e0] sm:$0xff]
          %v2325 = vld [vmem:[#allocation7 + $0x2e8] sm:$0xff]
          %v2326 = vld [vmem:[#allocation7 + $0x2f0] sm:$0xff]
          %v2327 = vld [vmem:[#allocation7 + $0x2f8] sm:$0xff]
          %v2328 = vld [vmem:[#allocation7 + $0x300] sm:$0xff]
          %v2329 = vld [vmem:[#allocation7 + $0x308] sm:$0xff]
          %v2330 = vld [vmem:[#allocation7 + $0x310] sm:$0xff]
          %v2331 = vld [vmem:[#allocation7 + $0x318] sm:$0xff]
          %v2332 = vld [vmem:[#allocation7 + $0x320] sm:$0xff]
          %v2333 = vld [vmem:[#allocation7 + $0x328] sm:$0xff]
          %v2334 = vld [vmem:[#allocation7 + $0x330] sm:$0xff]
          %v2335 = vld [vmem:[#allocation7 + $0x338] sm:$0xff]
          %v2336 = vld [vmem:[#allocation7 + $0x340] sm:$0xff]
          %v2337 = vld [vmem:[#allocation7 + $0x348] sm:$0xff]
          %v2338 = vld [vmem:[#allocation7 + $0x350] sm:$0xff]
          %v2339 = vld [vmem:[#allocation7 + $0x358] sm:$0xff]
          %v2340 = vld [vmem:[#allocation7 + $0x360] sm:$0xff]
          %v2341 = vld [vmem:[#allocation7 + $0x368] sm:$0xff]
          %v2342 = vld [vmem:[#allocation7 + $0x370] sm:$0xff]
          %v2343 = vld [vmem:[#allocation7 + $0x378] sm:$0xff]
          %v2344 = vld [vmem:[#allocation7 + $0x380] sm:$0xff]
          %v2345 = vld [vmem:[#allocation7 + $0x388] sm:$0xff]
          %v2346 = vld [vmem:[#allocation7 + $0x390] sm:$0xff]
          %v2347 = vld [vmem:[#allocation7 + $0x398] sm:$0xff]
          %v2348 = vld [vmem:[#allocation7 + $0x3a0] sm:$0xff]
          %v2349 = vld [vmem:[#allocation7 + $0x3a8] sm:$0xff]
          %v2350 = vld [vmem:[#allocation7 + $0x3b0] sm:$0xff]
          %v2351 = vld [vmem:[#allocation7 + $0x3b8] sm:$0xff]
          %v2352 = vld [vmem:[#allocation7 + $0x3c0] sm:$0xff]
          %v2353 = vld [vmem:[#allocation7 + $0x3c8] sm:$0xff]
          %v2354 = vld [vmem:[#allocation7 + $0x3d0] sm:$0xff]
          %v2355 = vld [vmem:[#allocation7 + $0x3d8] sm:$0xff]
          %v2356 = vld [vmem:[#allocation7 + $0x3e0] sm:$0xff]
          %v2357 = vld [vmem:[#allocation7 + $0x3e8] sm:$0xff]
          %v2358 = vld [vmem:[#allocation7 + $0x3f0] sm:$0xff]
          %v2359 = vld [vmem:[#allocation7 + $0x3f8] sm:$0xff]
          %v2488 = vunpack.c.l.b16 %v2232
          %v2489 = vunpack.c.h.b16 %v2232
          %v2490 = vunpack.c.l.b16 %v2233
          %v2491 = vunpack.c.h.b16 %v2233
          %v2492 = vunpack.c.l.b16 %v2234
          %v2493 = vunpack.c.h.b16 %v2234
          %v2494 = vunpack.c.l.b16 %v2235
          %v2495 = vunpack.c.h.b16 %v2235
          %v2496 = vunpack.c.l.b16 %v2236
          %v2497 = vunpack.c.h.b16 %v2236
          %v2498 = vunpack.c.l.b16 %v2237
          %v2499 = vunpack.c.h.b16 %v2237
          %v2500 = vunpack.c.l.b16 %v2238
          %v2501 = vunpack.c.h.b16 %v2238
          %v2502 = vunpack.c.l.b16 %v2239
          %v2503 = vunpack.c.h.b16 %v2239
          %v2504 = vunpack.c.l.b16 %v2240
          %v2505 = vunpack.c.h.b16 %v2240
          %v2506 = vunpack.c.l.b16 %v2241
          %v2507 = vunpack.c.h.b16 %v2241
          %v2508 = vunpack.c.l.b16 %v2242
          %v2509 = vunpack.c.h.b16 %v2242
          %v2510 = vunpack.c.l.b16 %v2243
          %v2511 = vunpack.c.h.b16 %v2243
          %v2512 = vunpack.c.l.b16 %v2244
          %v2513 = vunpack.c.h.b16 %v2244
          %v2514 = vunpack.c.l.b16 %v2245
          %v2515 = vunpack.c.h.b16 %v2245
          %v2516 = vunpack.c.l.b16 %v2246
          %v2517 = vunpack.c.h.b16 %v2246
          %v2518 = vunpack.c.l.b16 %v2247
          %v2519 = vunpack.c.h.b16 %v2247
          %v2520 = vunpack.c.l.b16 %v2248
          %v2521 = vunpack.c.h.b16 %v2248
          %v2522 = vunpack.c.l.b16 %v2249
          %v2523 = vunpack.c.h.b16 %v2249
          %v2524 = vunpack.c.l.b16 %v2250
          %v2525 = vunpack.c.h.b16 %v2250
          %v2526 = vunpack.c.l.b16 %v2251
          %v2527 = vunpack.c.h.b16 %v2251
          %v2528 = vunpack.c.l.b16 %v2252
          %v2529 = vunpack.c.h.b16 %v2252
          %v2530 = vunpack.c.l.b16 %v2253
          %v2531 = vunpack.c.h.b16 %v2253
          %v2532 = vunpack.c.l.b16 %v2254
          %v2533 = vunpack.c.h.b16 %v2254
          %v2534 = vunpack.c.l.b16 %v2255
          %v2535 = vunpack.c.h.b16 %v2255
          %v2536 = vunpack.c.l.b16 %v2256
          %v2537 = vunpack.c.h.b16 %v2256
          %v2538 = vunpack.c.l.b16 %v2257
          %v2539 = vunpack.c.h.b16 %v2257
          %v2540 = vunpack.c.l.b16 %v2258
          %v2541 = vunpack.c.h.b16 %v2258
          %v2542 = vunpack.c.l.b16 %v2259
          %v2543 = vunpack.c.h.b16 %v2259
          %v2544 = vunpack.c.l.b16 %v2260
          %v2545 = vunpack.c.h.b16 %v2260
          %v2546 = vunpack.c.l.b16 %v2261
          %v2547 = vunpack.c.h.b16 %v2261
          %v2548 = vunpack.c.l.b16 %v2262
          %v2549 = vunpack.c.h.b16 %v2262
          %v2550 = vunpack.c.l.b16 %v2263
          %v2551 = vunpack.c.h.b16 %v2263
          %v2552 = vunpack.c.l.b16 %v2264
          %v2553 = vunpack.c.h.b16 %v2264
          %v2554 = vunpack.c.l.b16 %v2265
          %v2555 = vunpack.c.h.b16 %v2265
          %v2556 = vunpack.c.l.b16 %v2266
          %v2557 = vunpack.c.h.b16 %v2266
          %v2558 = vunpack.c.l.b16 %v2267
          %v2559 = vunpack.c.h.b16 %v2267
          %v2560 = vunpack.c.l.b16 %v2268
          %v2561 = vunpack.c.h.b16 %v2268
          %v2562 = vunpack.c.l.b16 %v2269
          %v2563 = vunpack.c.h.b16 %v2269
          %v2564 = vunpack.c.l.b16 %v2270
          %v2565 = vunpack.c.h.b16 %v2270
          %v2566 = vunpack.c.l.b16 %v2271
          %v2567 = vunpack.c.h.b16 %v2271
          %v2568 = vunpack.c.l.b16 %v2272
          %v2569 = vunpack.c.h.b16 %v2272
          %v2570 = vunpack.c.l.b16 %v2273
          %v2571 = vunpack.c.h.b16 %v2273
          %v2572 = vunpack.c.l.b16 %v2274
          %v2573 = vunpack.c.h.b16 %v2274
          %v2574 = vunpack.c.l.b16 %v2275
          %v2575 = vunpack.c.h.b16 %v2275
          %v2576 = vunpack.c.l.b16 %v2276
          %v2577 = vunpack.c.h.b16 %v2276
          %v2578 = vunpack.c.l.b16 %v2277
          %v2579 = vunpack.c.h.b16 %v2277
          %v2580 = vunpack.c.l.b16 %v2278
          %v2581 = vunpack.c.h.b16 %v2278
          %v2582 = vunpack.c.l.b16 %v2279
          %v2583 = vunpack.c.h.b16 %v2279
          %v2584 = vunpack.c.l.b16 %v2280
          %v2585 = vunpack.c.h.b16 %v2280
          %v2586 = vunpack.c.l.b16 %v2281
          %v2587 = vunpack.c.h.b16 %v2281
          %v2588 = vunpack.c.l.b16 %v2282
          %v2589 = vunpack.c.h.b16 %v2282
          %v2590 = vunpack.c.l.b16 %v2283
          %v2591 = vunpack.c.h.b16 %v2283
          %v2592 = vunpack.c.l.b16 %v2284
          %v2593 = vunpack.c.h.b16 %v2284
          %v2594 = vunpack.c.l.b16 %v2285
          %v2595 = vunpack.c.h.b16 %v2285
          %v2596 = vunpack.c.l.b16 %v2286
          %v2597 = vunpack.c.h.b16 %v2286
          %v2598 = vunpack.c.l.b16 %v2287
          %v2599 = vunpack.c.h.b16 %v2287
          %v2600 = vunpack.c.l.b16 %v2288
          %v2601 = vunpack.c.h.b16 %v2288
          %v2602 = vunpack.c.l.b16 %v2289
          %v2603 = vunpack.c.h.b16 %v2289
          %v2604 = vunpack.c.l.b16 %v2290
          %v2605 = vunpack.c.h.b16 %v2290
          %v2606 = vunpack.c.l.b16 %v2291
          %v2607 = vunpack.c.h.b16 %v2291
          %v2608 = vunpack.c.l.b16 %v2292
          %v2609 = vunpack.c.h.b16 %v2292
          %v2610 = vunpack.c.l.b16 %v2293
          %v2611 = vunpack.c.h.b16 %v2293
          %v2612 = vunpack.c.l.b16 %v2294
          %v2613 = vunpack.c.h.b16 %v2294
          %v2614 = vunpack.c.l.b16 %v2295
          %v2615 = vunpack.c.h.b16 %v2295
          %v2616 = vunpack.c.l.b16 %v2296
          %v2617 = vunpack.c.h.b16 %v2296
          %v2618 = vunpack.c.l.b16 %v2297
          %v2619 = vunpack.c.h.b16 %v2297
          %v2620 = vunpack.c.l.b16 %v2298
          %v2621 = vunpack.c.h.b16 %v2298
          %v2622 = vunpack.c.l.b16 %v2299
          %v2623 = vunpack.c.h.b16 %v2299
          %v2624 = vunpack.c.l.b16 %v2300
          %v2625 = vunpack.c.h.b16 %v2300
          %v2626 = vunpack.c.l.b16 %v2301
          %v2627 = vunpack.c.h.b16 %v2301
          %v2628 = vunpack.c.l.b16 %v2302
          %v2629 = vunpack.c.h.b16 %v2302
          %v2630 = vunpack.c.l.b16 %v2303
          %v2631 = vunpack.c.h.b16 %v2303
          %v2632 = vunpack.c.l.b16 %v2304
          %v2633 = vunpack.c.h.b16 %v2304
          %v2634 = vunpack.c.l.b16 %v2305
          %v2635 = vunpack.c.h.b16 %v2305
          %v2636 = vunpack.c.l.b16 %v2306
          %v2637 = vunpack.c.h.b16 %v2306
          %v2638 = vunpack.c.l.b16 %v2307
          %v2639 = vunpack.c.h.b16 %v2307
          %v2640 = vunpack.c.l.b16 %v2308
          %v2641 = vunpack.c.h.b16 %v2308
          %v2642 = vunpack.c.l.b16 %v2309
          %v2643 = vunpack.c.h.b16 %v2309
          %v2644 = vunpack.c.l.b16 %v2310
          %v2645 = vunpack.c.h.b16 %v2310
          %v2646 = vunpack.c.l.b16 %v2311
          %v2647 = vunpack.c.h.b16 %v2311
          %v2648 = vunpack.c.l.b16 %v2312
          %v2649 = vunpack.c.h.b16 %v2312
          %v2650 = vunpack.c.l.b16 %v2313
          %v2651 = vunpack.c.h.b16 %v2313
          %v2652 = vunpack.c.l.b16 %v2314
          %v2653 = vunpack.c.h.b16 %v2314
          %v2654 = vunpack.c.l.b16 %v2315
          %v2655 = vunpack.c.h.b16 %v2315
          %v2656 = vunpack.c.l.b16 %v2316
          %v2657 = vunpack.c.h.b16 %v2316
          %v2658 = vunpack.c.l.b16 %v2317
          %v2659 = vunpack.c.h.b16 %v2317
          %v2660 = vunpack.c.l.b16 %v2318
          %v2661 = vunpack.c.h.b16 %v2318
          %v2662 = vunpack.c.l.b16 %v2319
          %v2663 = vunpack.c.h.b16 %v2319
          %v2664 = vunpack.c.l.b16 %v2320
          %v2665 = vunpack.c.h.b16 %v2320
          %v2666 = vunpack.c.l.b16 %v2321
          %v2667 = vunpack.c.h.b16 %v2321
          %v2668 = vunpack.c.l.b16 %v2322
          %v2669 = vunpack.c.h.b16 %v2322
          %v2670 = vunpack.c.l.b16 %v2323
          %v2671 = vunpack.c.h.b16 %v2323
          %v2672 = vunpack.c.l.b16 %v2324
          %v2673 = vunpack.c.h.b16 %v2324
          %v2674 = vunpack.c.l.b16 %v2325
          %v2675 = vunpack.c.h.b16 %v2325
          %v2676 = vunpack.c.l.b16 %v2326
          %v2677 = vunpack.c.h.b16 %v2326
          %v2678 = vunpack.c.l.b16 %v2327
          %v2679 = vunpack.c.h.b16 %v2327
          %v2680 = vunpack.c.l.b16 %v2328
          %v2681 = vunpack.c.h.b16 %v2328
          %v2682 = vunpack.c.l.b16 %v2329
          %v2683 = vunpack.c.h.b16 %v2329
          %v2684 = vunpack.c.l.b16 %v2330
          %v2685 = vunpack.c.h.b16 %v2330
          %v2686 = vunpack.c.l.b16 %v2331
          %v2687 = vunpack.c.h.b16 %v2331
          %v2688 = vunpack.c.l.b16 %v2332
          %v2689 = vunpack.c.h.b16 %v2332
          %v2690 = vunpack.c.l.b16 %v2333
          %v2691 = vunpack.c.h.b16 %v2333
          %v2692 = vunpack.c.l.b16 %v2334
          %v2693 = vunpack.c.h.b16 %v2334
          %v2694 = vunpack.c.l.b16 %v2335
          %v2695 = vunpack.c.h.b16 %v2335
          %v2696 = vunpack.c.l.b16 %v2336
          %v2697 = vunpack.c.h.b16 %v2336
          %v2698 = vunpack.c.l.b16 %v2337
          %v2699 = vunpack.c.h.b16 %v2337
          %v2700 = vunpack.c.l.b16 %v2338
          %v2701 = vunpack.c.h.b16 %v2338
          %v2702 = vunpack.c.l.b16 %v2339
          %v2703 = vunpack.c.h.b16 %v2339
          %v2704 = vunpack.c.l.b16 %v2340
          %v2705 = vunpack.c.h.b16 %v2340
          %v2706 = vunpack.c.l.b16 %v2341
          %v2707 = vunpack.c.h.b16 %v2341
          %v2708 = vunpack.c.l.b16 %v2342
          %v2709 = vunpack.c.h.b16 %v2342
          %v2710 = vunpack.c.l.b16 %v2343
          %v2711 = vunpack.c.h.b16 %v2343
          %v2712 = vunpack.c.l.b16 %v2344
          %v2713 = vunpack.c.h.b16 %v2344
          %v2714 = vunpack.c.l.b16 %v2345
          %v2715 = vunpack.c.h.b16 %v2345
          %v2716 = vunpack.c.l.b16 %v2346
          %v2717 = vunpack.c.h.b16 %v2346
          %v2718 = vunpack.c.l.b16 %v2347
          %v2719 = vunpack.c.h.b16 %v2347
          %v2720 = vunpack.c.l.b16 %v2348
          %v2721 = vunpack.c.h.b16 %v2348
          %v2722 = vunpack.c.l.b16 %v2349
          %v2723 = vunpack.c.h.b16 %v2349
          %v2724 = vunpack.c.l.b16 %v2350
          %v2725 = vunpack.c.h.b16 %v2350
          %v2726 = vunpack.c.l.b16 %v2351
          %v2727 = vunpack.c.h.b16 %v2351
          %v2728 = vunpack.c.l.b16 %v2352
          %v2729 = vunpack.c.h.b16 %v2352
          %v2730 = vunpack.c.l.b16 %v2353
          %v2731 = vunpack.c.h.b16 %v2353
          %v2732 = vunpack.c.l.b16 %v2354
          %v2733 = vunpack.c.h.b16 %v2354
          %v2734 = vunpack.c.l.b16 %v2355
          %v2735 = vunpack.c.h.b16 %v2355
          %v2736 = vunpack.c.l.b16 %v2356
          %v2737 = vunpack.c.h.b16 %v2356
          %v2738 = vunpack.c.l.b16 %v2357
          %v2739 = vunpack.c.h.b16 %v2357
          %v2740 = vunpack.c.l.b16 %v2358
          %v2741 = vunpack.c.h.b16 %v2358
          %v2742 = vunpack.c.l.b16 %v2359
          %v2743 = vunpack.c.h.b16 %v2359
          %v2744 = vpack.c.b16 %v2490, %v2488
          %v2745 = vpack.c.b16 %v2491, %v2489
          %v2746 = vpack.c.b16 %v2494, %v2492
          %v2747 = vpack.c.b16 %v2495, %v2493
          %v2748 = vpack.c.b16 %v2498, %v2496
          %v2749 = vpack.c.b16 %v2499, %v2497
          %v2750 = vpack.c.b16 %v2502, %v2500
          %v2751 = vpack.c.b16 %v2503, %v2501
          %v2752 = vpack.c.b16 %v2506, %v2504
          %v2753 = vpack.c.b16 %v2507, %v2505
          %v2754 = vpack.c.b16 %v2510, %v2508
          %v2755 = vpack.c.b16 %v2511, %v2509
          %v2756 = vpack.c.b16 %v2514, %v2512
          %v2757 = vpack.c.b16 %v2515, %v2513
          %v2758 = vpack.c.b16 %v2518, %v2516
          %v2759 = vpack.c.b16 %v2519, %v2517
          %v2760 = vpack.c.b16 %v2522, %v2520
          %v2761 = vpack.c.b16 %v2523, %v2521
          %v2762 = vpack.c.b16 %v2526, %v2524
          %v2763 = vpack.c.b16 %v2527, %v2525
          %v2764 = vpack.c.b16 %v2530, %v2528
          %v2765 = vpack.c.b16 %v2531, %v2529
          %v2766 = vpack.c.b16 %v2534, %v2532
          %v2767 = vpack.c.b16 %v2535, %v2533
          %v2768 = vpack.c.b16 %v2538, %v2536
          %v2769 = vpack.c.b16 %v2539, %v2537
          %v2770 = vpack.c.b16 %v2542, %v2540
          %v2771 = vpack.c.b16 %v2543, %v2541
          %v2772 = vpack.c.b16 %v2546, %v2544
          %v2773 = vpack.c.b16 %v2547, %v2545
          %v2774 = vpack.c.b16 %v2550, %v2548
          %v2775 = vpack.c.b16 %v2551, %v2549
          %v2776 = vpack.c.b16 %v2554, %v2552
          %v2777 = vpack.c.b16 %v2555, %v2553
          %v2778 = vpack.c.b16 %v2558, %v2556
          %v2779 = vpack.c.b16 %v2559, %v2557
          %v2780 = vpack.c.b16 %v2562, %v2560
          %v2781 = vpack.c.b16 %v2563, %v2561
          %v2782 = vpack.c.b16 %v2566, %v2564
          %v2783 = vpack.c.b16 %v2567, %v2565
          %v2784 = vpack.c.b16 %v2570, %v2568
          %v2785 = vpack.c.b16 %v2571, %v2569
          %v2786 = vpack.c.b16 %v2574, %v2572
          %v2787 = vpack.c.b16 %v2575, %v2573
          %v2788 = vpack.c.b16 %v2578, %v2576
          %v2789 = vpack.c.b16 %v2579, %v2577
          %v2790 = vpack.c.b16 %v2582, %v2580
          %v2791 = vpack.c.b16 %v2583, %v2581
          %v2792 = vpack.c.b16 %v2586, %v2584
          %v2793 = vpack.c.b16 %v2587, %v2585
          %v2794 = vpack.c.b16 %v2590, %v2588
          %v2795 = vpack.c.b16 %v2591, %v2589
          %v2796 = vpack.c.b16 %v2594, %v2592
          %v2797 = vpack.c.b16 %v2595, %v2593
          %v2798 = vpack.c.b16 %v2598, %v2596
          %v2799 = vpack.c.b16 %v2599, %v2597
          %v2800 = vpack.c.b16 %v2602, %v2600
          %v2801 = vpack.c.b16 %v2603, %v2601
          %v2802 = vpack.c.b16 %v2606, %v2604
          %v2803 = vpack.c.b16 %v2607, %v2605
          %v2804 = vpack.c.b16 %v2610, %v2608
          %v2805 = vpack.c.b16 %v2611, %v2609
          %v2806 = vpack.c.b16 %v2614, %v2612
          %v2807 = vpack.c.b16 %v2615, %v2613
          %v2808 = vpack.c.b16 %v2618, %v2616
          %v2809 = vpack.c.b16 %v2619, %v2617
          %v2810 = vpack.c.b16 %v2622, %v2620
          %v2811 = vpack.c.b16 %v2623, %v2621
          %v2812 = vpack.c.b16 %v2626, %v2624
          %v2813 = vpack.c.b16 %v2627, %v2625
          %v2814 = vpack.c.b16 %v2630, %v2628
          %v2815 = vpack.c.b16 %v2631, %v2629
          %v2816 = vpack.c.b16 %v2634, %v2632
          %v2817 = vpack.c.b16 %v2635, %v2633
          %v2818 = vpack.c.b16 %v2638, %v2636
          %v2819 = vpack.c.b16 %v2639, %v2637
          %v2820 = vpack.c.b16 %v2642, %v2640
          %v2821 = vpack.c.b16 %v2643, %v2641
          %v2822 = vpack.c.b16 %v2646, %v2644
          %v2823 = vpack.c.b16 %v2647, %v2645
          %v2824 = vpack.c.b16 %v2650, %v2648
          %v2825 = vpack.c.b16 %v2651, %v2649
          %v2826 = vpack.c.b16 %v2654, %v2652
          %v2827 = vpack.c.b16 %v2655, %v2653
          %v2828 = vpack.c.b16 %v2658, %v2656
          %v2829 = vpack.c.b16 %v2659, %v2657
          %v2830 = vpack.c.b16 %v2662, %v2660
          %v2831 = vpack.c.b16 %v2663, %v2661
          %v2832 = vpack.c.b16 %v2666, %v2664
          %v2833 = vpack.c.b16 %v2667, %v2665
          %v2834 = vpack.c.b16 %v2670, %v2668
          %v2835 = vpack.c.b16 %v2671, %v2669
          %v2836 = vpack.c.b16 %v2674, %v2672
          %v2837 = vpack.c.b16 %v2675, %v2673
          %v2838 = vpack.c.b16 %v2678, %v2676
          %v2839 = vpack.c.b16 %v2679, %v2677
          %v2840 = vpack.c.b16 %v2682, %v2680
          %v2841 = vpack.c.b16 %v2683, %v2681
          %v2842 = vpack.c.b16 %v2686, %v2684
          %v2843 = vpack.c.b16 %v2687, %v2685
          %v2844 = vpack.c.b16 %v2690, %v2688
          %v2845 = vpack.c.b16 %v2691, %v2689
          %v2846 = vpack.c.b16 %v2694, %v2692
          %v2847 = vpack.c.b16 %v2695, %v2693
          %v2848 = vpack.c.b16 %v2698, %v2696
          %v2849 = vpack.c.b16 %v2699, %v2697
          %v2850 = vpack.c.b16 %v2702, %v2700
          %v2851 = vpack.c.b16 %v2703, %v2701
          %v2852 = vpack.c.b16 %v2706, %v2704
          %v2853 = vpack.c.b16 %v2707, %v2705
          %v2854 = vpack.c.b16 %v2710, %v2708
          %v2855 = vpack.c.b16 %v2711, %v2709
          %v2856 = vpack.c.b16 %v2714, %v2712
          %v2857 = vpack.c.b16 %v2715, %v2713
          %v2858 = vpack.c.b16 %v2718, %v2716
          %v2859 = vpack.c.b16 %v2719, %v2717
          %v2860 = vpack.c.b16 %v2722, %v2720
          %v2861 = vpack.c.b16 %v2723, %v2721
          %v2862 = vpack.c.b16 %v2726, %v2724
          %v2863 = vpack.c.b16 %v2727, %v2725
          %v2864 = vpack.c.b16 %v2730, %v2728
          %v2865 = vpack.c.b16 %v2731, %v2729
          %v2866 = vpack.c.b16 %v2734, %v2732
          %v2867 = vpack.c.b16 %v2735, %v2733
          %v2868 = vpack.c.b16 %v2738, %v2736
          %v2869 = vpack.c.b16 %v2739, %v2737
          %v2870 = vpack.c.b16 %v2742, %v2740
          %v2871 = vpack.c.b16 %v2743, %v2741
          %3000 = vmatprep.subr.bf16.mxu0 %v2759
          %3001 = vmatpush1.bf16.msra.mxu0 %v2758
          %3002 = vmatprep.subr.bf16.mxu0 %v2757
          %3003 = vmatpush1.bf16.msra.mxu0 %v2756
          %3004 = vmatprep.subr.bf16.mxu0 %v2755
          %3005 = vmatpush1.bf16.msra.mxu0 %v2754
          %3006 = vmatprep.subr.bf16.mxu0 %v2753
          %3007 = vmatpush1.bf16.msra.mxu0 %v2752
          %3008 = vmatprep.subr.bf16.mxu0 %v2751
          %3009 = vmatpush1.bf16.msra.mxu0 %v2750
          %3010 = vmatprep.subr.bf16.mxu0 %v2749
          %3011 = vmatpush1.bf16.msra.mxu0 %v2748
          %3012 = vmatprep.subr.bf16.mxu0 %v2747
          %3013 = vmatpush1.bf16.msra.mxu0 %v2746
          %3014 = vmatprep.subr.bf16.mxu0 %v2745
          %3015 = vmatpush1.bf16.msra.mxu0 %v2744
          %3016 = vmatprep.subr.bf16.mxu0 %v2775
          %3017 = vmatpush2.bf16.msra.mxu0 %v2774
          %3018 = vmatprep.subr.bf16.mxu0 %v2773
          %3019 = vmatpush2.bf16.msra.mxu0 %v2772
          %3020 = vmatprep.subr.bf16.mxu0 %v2771
          %3021 = vmatpush2.bf16.msra.mxu0 %v2770
          %3022 = vmatprep.subr.bf16.mxu0 %v2769
          %3023 = vmatpush2.bf16.msra.mxu0 %v2768
          %3024 = vmatprep.subr.bf16.mxu0 %v2767
          %3025 = vmatpush2.bf16.msra.mxu0 %v2766
          %3026 = vmatprep.subr.bf16.mxu0 %v2765
          %3027 = vmatpush2.bf16.msra.mxu0 %v2764
          %3028 = vmatprep.subr.bf16.mxu0 %v2763
          %3029 = vmatpush2.bf16.msra.mxu0 %v2762
          %3030 = vmatprep.subr.bf16.mxu0 %v2761
          %3031 = vmatpush2.bf16.msra.mxu0 %v2760
          %3032 = vmatprep.mubr.bf16.mxu0 %v2225
          %3033 = vmatmul.mubr.bf16.gmra.mxu0 %v2224
          %v3034 = vpop.f32.mrf.mxu0
          %v3035 = vadd.f32 0.0, %v3034
          %v3036 = vpop.f32.mrf.mxu0
          %v3037 = vadd.f32 0.0, %v3036
          %v3038 = vpop.f32.mrf.mxu0
          %v3039 = vpop.f32.mrf.mxu0
          %3040 = vdwg.mxu0
          %3041 = vmatprep.subr.bf16.mxu0 %v2791
          %3042 = vmatpush1.bf16.msra.mxu0 %v2790
          %3043 = vmatprep.subr.bf16.mxu0 %v2789
          %3044 = vmatpush1.bf16.msra.mxu0 %v2788
          %3045 = vmatprep.subr.bf16.mxu0 %v2787
          %3046 = vmatpush1.bf16.msra.mxu0 %v2786
          %3047 = vmatprep.subr.bf16.mxu0 %v2785
          %3048 = vmatpush1.bf16.msra.mxu0 %v2784
          %3049 = vmatprep.subr.bf16.mxu0 %v2783
          %3050 = vmatpush1.bf16.msra.mxu0 %v2782
          %3051 = vmatprep.subr.bf16.mxu0 %v2781
          %3052 = vmatpush1.bf16.msra.mxu0 %v2780
          %3053 = vmatprep.subr.bf16.mxu0 %v2779
          %3054 = vmatpush1.bf16.msra.mxu0 %v2778
          %3055 = vmatprep.subr.bf16.mxu0 %v2777
          %3056 = vmatpush1.bf16.msra.mxu0 %v2776
          %3057 = vmatprep.subr.bf16.mxu0 %v2807
          %3058 = vmatpush2.bf16.msra.mxu0 %v2806
          %3059 = vmatprep.subr.bf16.mxu0 %v2805
          %3060 = vmatpush2.bf16.msra.mxu0 %v2804
          %3061 = vmatprep.subr.bf16.mxu0 %v2803
          %3062 = vmatpush2.bf16.msra.mxu0 %v2802
          %3063 = vmatprep.subr.bf16.mxu0 %v2801
          %3064 = vmatpush2.bf16.msra.mxu0 %v2800
          %3065 = vmatprep.subr.bf16.mxu0 %v2799
          %3066 = vmatpush2.bf16.msra.mxu0 %v2798
          %3067 = vmatprep.subr.bf16.mxu0 %v2797
          %3068 = vmatpush2.bf16.msra.mxu0 %v2796
          %3069 = vmatprep.subr.bf16.mxu0 %v2795
          %3070 = vmatpush2.bf16.msra.mxu0 %v2794
          %3071 = vmatprep.subr.bf16.mxu0 %v2793
          %3072 = vmatpush2.bf16.msra.mxu0 %v2792
          %3073 = vmatprep.mubr.bf16.mxu0 %v2227
          %3074 = vmatmul.mubr.bf16.gmra.mxu0 %v2226
          %v3075 = vpop.f32.mrf.mxu0
          %v3076 = vadd.f32 %v3035, %v3075
          %v3077 = vpop.f32.mrf.mxu0
          %v3078 = vadd.f32 %v3037, %v3077
          %v3079 = vpop.f32.mrf.mxu0
          %v3080 = vpop.f32.mrf.mxu0
          %3081 = vdwg.mxu0
          %3082 = vmatprep.subr.bf16.mxu0 %v2823
          %3083 = vmatpush1.bf16.msra.mxu0 %v2822
          %3084 = vmatprep.subr.bf16.mxu0 %v2821
          %3085 = vmatpush1.bf16.msra.mxu0 %v2820
          %3086 = vmatprep.subr.bf16.mxu0 %v2819
          %3087 = vmatpush1.bf16.msra.mxu0 %v2818
          %3088 = vmatprep.subr.bf16.mxu0 %v2817
          %3089 = vmatpush1.bf16.msra.mxu0 %v2816
          %3090 = vmatprep.subr.bf16.mxu0 %v2815
          %3091 = vmatpush1.bf16.msra.mxu0 %v2814
          %3092 = vmatprep.subr.bf16.mxu0 %v2813
          %3093 = vmatpush1.bf16.msra.mxu0 %v2812
          %3094 = vmatprep.subr.bf16.mxu0 %v2811
          %3095 = vmatpush1.bf16.msra.mxu0 %v2810
          %3096 = vmatprep.subr.bf16.mxu0 %v2809
          %3097 = vmatpush1.bf16.msra.mxu0 %v2808
          %3098 = vmatprep.subr.bf16.mxu0 %v2839
          %3099 = vmatpush2.bf16.msra.mxu0 %v2838
          %3100 = vmatprep.subr.bf16.mxu0 %v2837
          %3101 = vmatpush2.bf16.msra.mxu0 %v2836
          %3102 = vmatprep.subr.bf16.mxu0 %v2835
          %3103 = vmatpush2.bf16.msra.mxu0 %v2834
          %3104 = vmatprep.subr.bf16.mxu0 %v2833
          %3105 = vmatpush2.bf16.msra.mxu0 %v2832
          %3106 = vmatprep.subr.bf16.mxu0 %v2831
          %3107 = vmatpush2.bf16.msra.mxu0 %v2830
          %3108 = vmatprep.subr.bf16.mxu0 %v2829
          %3109 = vmatpush2.bf16.msra.mxu0 %v2828
          %3110 = vmatprep.subr.bf16.mxu0 %v2827
          %3111 = vmatpush2.bf16.msra.mxu0 %v2826
          %3112 = vmatprep.subr.bf16.mxu0 %v2825
          %3113 = vmatpush2.bf16.msra.mxu0 %v2824
          %3114 = vmatprep.mubr.bf16.mxu0 %v2229
          %3115 = vmatmul.mubr.bf16.gmra.mxu0 %v2228
          %v3116 = vpop.f32.mrf.mxu0
          %v3117 = vadd.f32 %v3076, %v3116
          %v3118 = vpop.f32.mrf.mxu0
          %v3119 = vadd.f32 %v3078, %v3118
          %v3120 = vpop.f32.mrf.mxu0
          %v3121 = vpop.f32.mrf.mxu0
          %3122 = vdwg.mxu0
          %3123 = vmatprep.subr.bf16.mxu0 %v2855
          %3124 = vmatpush1.bf16.msra.mxu0 %v2854
          %3125 = vmatprep.subr.bf16.mxu0 %v2853
          %3126 = vmatpush1.bf16.msra.mxu0 %v2852
          %3127 = vmatprep.subr.bf16.mxu0 %v2851
          %3128 = vmatpush1.bf16.msra.mxu0 %v2850
          %3129 = vmatprep.subr.bf16.mxu0 %v2849
          %3130 = vmatpush1.bf16.msra.mxu0 %v2848
          %3131 = vmatprep.subr.bf16.mxu0 %v2847
          %3132 = vmatpush1.bf16.msra.mxu0 %v2846
          %3133 = vmatprep.subr.bf16.mxu0 %v2845
          %3134 = vmatpush1.bf16.msra.mxu0 %v2844
          %3135 = vmatprep.subr.bf16.mxu0 %v2843
          %3136 = vmatpush1.bf16.msra.mxu0 %v2842
          %3137 = vmatprep.subr.bf16.mxu0 %v2841
          %3138 = vmatpush1.bf16.msra.mxu0 %v2840
          %3139 = vmatprep.subr.bf16.mxu0 %v2871
          %3140 = vmatpush2.bf16.msra.mxu0 %v2870
          %3141 = vmatprep.subr.bf16.mxu0 %v2869
          %3142 = vmatpush2.bf16.msra.mxu0 %v2868
          %3143 = vmatprep.subr.bf16.mxu0 %v2867
          %3144 = vmatpush2.bf16.msra.mxu0 %v2866
          %3145 = vmatprep.subr.bf16.mxu0 %v2865
          %3146 = vmatpush2.bf16.msra.mxu0 %v2864
          %3147 = vmatprep.subr.bf16.mxu0 %v2863
          %3148 = vmatpush2.bf16.msra.mxu0 %v2862
          %3149 = vmatprep.subr.bf16.mxu0 %v2861
          %3150 = vmatpush2.bf16.msra.mxu0 %v2860
          %3151 = vmatprep.subr.bf16.mxu0 %v2859
          %3152 = vmatpush2.bf16.msra.mxu0 %v2858
          %3153 = vmatprep.subr.bf16.mxu0 %v2857
          %3154 = vmatpush2.bf16.msra.mxu0 %v2856
          %3155 = vmatprep.mubr.bf16.mxu0 %v2231
          %3156 = vmatmul.mubr.bf16.gmra.mxu0 %v2230
          %v3157 = vpop.f32.mrf.mxu0
          %v3158 = vadd.f32 %v3117, %v3157
          %v3159 = vpop.f32.mrf.mxu0
          %v3160 = vadd.f32 %v3119, %v3159
          %v3161 = vpop.f32.mrf.mxu0
          %v3162 = vpop.f32.mrf.mxu0
          %3163 = vdwg.mxu0
          %v3164 = vmax.f32 %v3158, 0.0
          %v3165 = vmax.f32 %v3160, 0.0
          %v3166 = vpack.c.bf16 %v3164, %v3164
          %v3167 = vpack.c.bf16 %v3165, %v3165
          %v3168 = vld [vmem:[%s3] sm:$0xf]
          %v3169 = vld [vmem:[%s3 + $0x4] sm:$0xf]
          %v3170 = vld [vmem:[%s3 + $0x8] sm:$0xf]
          %v3171 = vld [vmem:[%s3 + $0xc] sm:$0xf]
          %v3172 = vld [vmem:[%s3 + $0x10] sm:$0xf]
          %v3173 = vld [vmem:[%s3 + $0x14] sm:$0xf]
          %v3174 = vld [vmem:[%s3 + $0x18] sm:$0xf]
          %v3175 = vld [vmem:[%s3 + $0x1c] sm:$0xf]
          %v3176 = vld [vmem:[%s3 + $0x20] sm:$0xf]
          %v3177 = vld [vmem:[%s3 + $0x24] sm:$0xf]
          %v3178 = vld [vmem:[%s3 + $0x28] sm:$0xf]
          %v3179 = vld [vmem:[%s3 + $0x2c] sm:$0xf]
          %v3180 = vld [vmem:[%s3 + $0x30] sm:$0xf]
          %v3181 = vld [vmem:[%s3 + $0x34] sm:$0xf]
          %v3182 = vld [vmem:[%s3 + $0x38] sm:$0xf]
          %v3183 = vld [vmem:[%s3 + $0x3c] sm:$0xf]
          %v3184 = vld [vmem:[%s3 + $0x40] sm:$0xf]
          %v3185 = vld [vmem:[%s3 + $0x44] sm:$0xf]
          %v3186 = vld [vmem:[%s3 + $0x48] sm:$0xf]
          %v3187 = vld [vmem:[%s3 + $0x4c] sm:$0xf]
          %v3188 = vld [vmem:[%s3 + $0x50] sm:$0xf]
          %v3189 = vld [vmem:[%s3 + $0x54] sm:$0xf]
          %v3190 = vld [vmem:[%s3 + $0x58] sm:$0xf]
          %v3191 = vld [vmem:[%s3 + $0x5c] sm:$0xf]
          %v3192 = vld [vmem:[%s3 + $0x60] sm:$0xf]
          %v3193 = vld [vmem:[%s3 + $0x64] sm:$0xf]
          %v3194 = vld [vmem:[%s3 + $0x68] sm:$0xf]
          %v3195 = vld [vmem:[%s3 + $0x6c] sm:$0xf]
          %v3196 = vld [vmem:[%s3 + $0x70] sm:$0xf]
          %v3197 = vld [vmem:[%s3 + $0x74] sm:$0xf]
          %v3198 = vld [vmem:[%s3 + $0x78] sm:$0xf]
          %v3199 = vld [vmem:[%s3 + $0x7c] sm:$0xf]
          %v3232 = vunpack.c.l.b16 %v3168
          %v3233 = vunpack.c.l.b16 %v3169
          %v3234 = vunpack.c.l.b16 %v3170
          %v3235 = vunpack.c.l.b16 %v3171
          %v3236 = vunpack.c.l.b16 %v3172
          %v3237 = vunpack.c.l.b16 %v3173
          %v3238 = vunpack.c.l.b16 %v3174
          %v3239 = vunpack.c.l.b16 %v3175
          %v3240 = vunpack.c.l.b16 %v3176
          %v3241 = vunpack.c.l.b16 %v3177
          %v3242 = vunpack.c.l.b16 %v3178
          %v3243 = vunpack.c.l.b16 %v3179
          %v3244 = vunpack.c.l.b16 %v3180
          %v3245 = vunpack.c.l.b16 %v3181
          %v3246 = vunpack.c.l.b16 %v3182
          %v3247 = vunpack.c.l.b16 %v3183
          %v3248 = vunpack.c.l.b16 %v3184
          %v3249 = vunpack.c.l.b16 %v3185
          %v3250 = vunpack.c.l.b16 %v3186
          %v3251 = vunpack.c.l.b16 %v3187
          %v3252 = vunpack.c.l.b16 %v3188
          %v3253 = vunpack.c.l.b16 %v3189
          %v3254 = vunpack.c.l.b16 %v3190
          %v3255 = vunpack.c.l.b16 %v3191
          %v3256 = vunpack.c.l.b16 %v3192
          %v3257 = vunpack.c.l.b16 %v3193
          %v3258 = vunpack.c.l.b16 %v3194
          %v3259 = vunpack.c.l.b16 %v3195
          %v3260 = vunpack.c.l.b16 %v3196
          %v3261 = vunpack.c.l.b16 %v3197
          %v3262 = vunpack.c.l.b16 %v3198
          %v3263 = vunpack.c.l.b16 %v3199
          %v3264 = vpack.c.b16 %v3233, %v3232
          %v3265 = vpack.c.b16 %v3235, %v3234
          %v3266 = vpack.c.b16 %v3237, %v3236
          %v3267 = vpack.c.b16 %v3239, %v3238
          %v3268 = vpack.c.b16 %v3241, %v3240
          %v3269 = vpack.c.b16 %v3243, %v3242
          %v3270 = vpack.c.b16 %v3245, %v3244
          %v3271 = vpack.c.b16 %v3247, %v3246
          %v3272 = vpack.c.b16 %v3249, %v3248
          %v3273 = vpack.c.b16 %v3251, %v3250
          %v3274 = vpack.c.b16 %v3253, %v3252
          %v3275 = vpack.c.b16 %v3255, %v3254
          %v3276 = vpack.c.b16 %v3257, %v3256
          %v3277 = vpack.c.b16 %v3259, %v3258
          %v3278 = vpack.c.b16 %v3261, %v3260
          %v3279 = vpack.c.b16 %v3263, %v3262
          %3296 = vmatprep.subr.bf16.mxu0 0
          %3297 = vmatpush1.bf16.msra.mxu0 %v3271
          %3298 = vmatprep.subr.bf16.mxu0 0
          %3299 = vmatpush1.bf16.msra.mxu0 %v3270
          %3300 = vmatprep.subr.bf16.mxu0 0
          %3301 = vmatpush1.bf16.msra.mxu0 %v3269
          %3302 = vmatprep.subr.bf16.mxu0 0
          %3303 = vmatpush1.bf16.msra.mxu0 %v3268
          %3304 = vmatprep.subr.bf16.mxu0 0
          %3305 = vmatpush1.bf16.msra.mxu0 %v3267
          %3306 = vmatprep.subr.bf16.mxu0 0
          %3307 = vmatpush1.bf16.msra.mxu0 %v3266
          %3308 = vmatprep.subr.bf16.mxu0 0
          %3309 = vmatpush1.bf16.msra.mxu0 %v3265
          %3310 = vmatprep.subr.bf16.mxu0 0
          %3311 = vmatpush1.bf16.msra.mxu0 %v3264
          %3312 = vmatprep.subr.bf16.mxu0 0
          %3313 = vmatpush2.bf16.msra.mxu0 %v3279
          %3314 = vmatprep.subr.bf16.mxu0 0
          %3315 = vmatpush2.bf16.msra.mxu0 %v3278
          %3316 = vmatprep.subr.bf16.mxu0 0
          %3317 = vmatpush2.bf16.msra.mxu0 %v3277
          %3318 = vmatprep.subr.bf16.mxu0 0
          %3319 = vmatpush2.bf16.msra.mxu0 %v3276
          %3320 = vmatprep.subr.bf16.mxu0 0
          %3321 = vmatpush2.bf16.msra.mxu0 %v3275
          %3322 = vmatprep.subr.bf16.mxu0 0
          %3323 = vmatpush2.bf16.msra.mxu0 %v3274
          %3324 = vmatprep.subr.bf16.mxu0 0
          %3325 = vmatpush2.bf16.msra.mxu0 %v3273
          %3326 = vmatprep.subr.bf16.mxu0 0
          %3327 = vmatpush2.bf16.msra.mxu0 %v3272
          %3328 = vmatprep.mubr.bf16.mxu0 %v3167
          %3329 = vmatmul.mubr.bf16.gmra.mxu0 %v3166
          %v3330 = vpop.f32.mrf.mxu0
          %v3331 = vadd.f32 0.0, %v3330
          %v3332 = vpop.f32.mrf.mxu0
          %v3333 = vpop.f32.mrf.mxu0
          %v3334 = vpop.f32.mrf.mxu0
          %3335 = vdwg.mxu0
          %vm3336 = vcmask 7168
          %3337 = vst.msk [vmem:[%s286] sm:$0xff] %vm3336, %v3331
        $region56: #{tpu_custom_call.1} parent=35 // pred_fallthru
          _
        %p3338 = scmp.lt.s32.totalorder %s25, 0
        %s3339 = scalar_select %p3338, %s25, 0
        %s3340 = smul.addr %s3339, 8
        %s3341 = scalar_lea.vmem %s4, %s3340
        // Predicated region
        $region57: #{tpu_custom_call.1} parent=35 // pred_check
          %p3342 = pneg %p147
        $region58: #{tpu_custom_call.1} parent=35 // pred_check_branch
          %3344 = sbr.rel (%p3342) target = $region60
        $region59: #{tpu_custom_call.1} parent=35 // pred_region
          _
        $region60: #{tpu_custom_call.1} parent=35 // pred_fallthru
          _
        // Predicated region
        $region61: #{tpu_custom_call.1} parent=35 // pred_check
          %p3345 = pneg %p147
        $region62: #{tpu_custom_call.1} parent=35 // pred_check_branch
          %3347 = sbr.rel (%p3345) target = $region64
        $region63: #{tpu_custom_call.1} parent=35 // pred_region
          %p3348 = scmp.lt.s32.totalorder %s25, 0
          %s3349 = scalar_select %p3348, %s25, 0
          %s3350 = smul.addr %s3349, 8
          %s3351 = scalar_lea.vmem %s4, %s3350
        $region64: #{tpu_custom_call.1} parent=35 // pred_fallthru
          _
      $region36: #{tpu_custom_call.1} parent=5 // pred_fallthru
        _
      %p3352 = scmp.le.s32.totalorder 2, %s16
      // Predicated region
      $region65: #{tpu_custom_call.1} parent=5 // pred_check
        %p3353 = pneg %p3352
      $region66: #{tpu_custom_call.1} parent=5 // pred_check_branch
        %3355 = sbr.rel (%p3353) target = $region68
      $region67: #{tpu_custom_call.1} parent=5 // pred_region
        %s3356 = ssub.s32 %s16, 2
      $region68: #{tpu_custom_call.1} parent=5 // pred_fallthru
        _
    $region6: #{tpu_custom_call.1} parent=1 // loop_footer
      %s20 = sadd.s32 1, %s16
    $region7: #{tpu_custom_call.1} parent=1 // loop_footer_branch
      %15 = sbr.rel target = $region3
    $region8: #{tpu_custom_call.1} parent=1 // loop_exit
      _
    %3357 = vsyncpa [#allocation4], 1
    %s3358 = scalar_lea.sflag [#allocation4], 1
    %3359 = vsyncpa %s3358, 1
    %3360 = vsyncpa [#allocation6], 1
    %s3361 = scalar_lea.sflag [#allocation6], 1
    %3362 = vsyncpa %s3361, 1

</llo_original>
